<compile_context>
chip_gen: v5e
topology: v5e:2x2
jax: 0.10.0
libtpu: 0.0.40
codegen_flags: <defaults>
</compile_context>

<pallas_src>
import jax
import jax.numpy as jnp
from jax.experimental import pallas as pl
from jax.experimental.pallas import tpu as pltpu

INPUT_DIM = 12
HIDDEN_DIM = 128          # small but lane-dense
OUTPUT_DIM = 5

IN_PAD = 128              # input features zero-padded to a full lane width
OUT_PAD = 128             # class logits zero-padded to a full lane width

_MASK_VAL = -1e30         # f32 masking constant (kept out of bf16 on purpose)


# ----------------------------- fused Pallas kernel ------------------------------


def _fused_gcn_gat_kernel(a_sl_ref, dis_ref, x_ref, w_ref, vec_ref, o_ref):
    f32 = jnp.float32
    bf16 = jnp.bfloat16

    a_sl = a_sl_ref[...]                     # (N, N) bf16, exact integer edge counts + forced self loops
    dis = dis_ref[...]                       # (N, 1) f32, D^{-1/2}

    def w(k):                                # static lane-slice of the coalesced weight slab -> (128,128) bf16
        return w_ref[:, k * HIDDEN_DIM:(k + 1) * HIDDEN_DIM]

    def v(k):                                # static row of the coalesced bias/attention slab -> (1,128) f32
        return vec_ref[k:k + 1, :]

    def gcn(h, k, relu):
        # D^{-1/2} A_sl D^{-1/2} (h W) + b  ==  dis * (A_sl @ (dis * (h W))) + b   (no a_hat needed)
        z = jnp.dot(h.astype(bf16), w(k), preferred_element_type=f32)              # (N, 128)
        z = jnp.dot(a_sl, (dis * z).astype(bf16), preferred_element_type=f32)       # aggregation
        z = dis * z + v(k)
        return jnp.maximum(z, 0.0) if relu else z

    # conv1 -> relu -> (dropout = identity) -> conv2 -> relu
    h = gcn(x_ref[...], 0, relu=True)
    h = gcn(h, 1, relu=True)

    # GATConv (single head, dense masked softmax over incoming edges + self loops) -> relu
    hg = jnp.dot(h.astype(bf16), w(2), preferred_element_type=f32)                   # (N, 128)
    a_src = v(6)                                                                     # (1, 128)
    a_dst = v(7)                                                                     # (1, 128) (a_dst^T as a row)
    e_src = jax.lax.dot_general(a_src, hg, (((1,), (1,)), ((), ())),
                                preferred_element_type=f32)                          # (1, N): <hg_j, a_src>
    e_dst = jnp.sum(hg * a_dst, axis=1, keepdims=True)                               # (N, 1): <hg_i, a_dst>
    e = e_dst + e_src                                                                # e[i, j] for edge j -> i
    e = jnp.where(e > 0, e, 0.2 * e)                                                 # LeakyReLU(0.2)
    e = jnp.where(a_sl > 0, e, _MASK_VAL)                                            # mask = support(A_sl)
    e_max = jnp.max(e, axis=1, keepdims=True)                                        # finite (self loop forced)
    p = jnp.exp(e - e_max)                                                           # masked entries underflow to 0
    hv = jnp.dot(p.astype(bf16), hg.astype(bf16), preferred_element_type=f32)        # un-normalized aggregation
    denom = jnp.sum(p, axis=1, keepdims=True)
    h = hv * pl.reciprocal(denom, approx=True) + v(2)                                # normalize after the matmul
    h = jnp.maximum(h, 0.0)

    # conv3 -> relu -> conv4 -> relu -> conv5
    h = gcn(h, 3, relu=True)
    h = gcn(h, 4, relu=True)
    z = gcn(h, 5, relu=False)                                                        # (N, OUT_PAD)

    # log_softmax over the 5 valid class columns only (padded lanes masked out), f32 throughout
    col = jax.lax.broadcasted_iota(jnp.int32, z.shape, 1)
    zm = jnp.where(col < OUTPUT_DIM, z, _MASK_VAL)
    z_max = jnp.max(zm, axis=1, keepdims=True)
    lse = jnp.log(jnp.sum(jnp.exp(zm - z_max), axis=1, keepdims=True)) + z_max
    o_ref[...] = z - lse


# ----------------------------- wrapper -------------------------------


def _vmem_limit_bytes(n_pad):
    # Size the scoped-VMEM limit from the resident N^2 footprint; cap per-generation physical VMEM.
    phys = 64 * 1024 * 1024                                   # conservative fallback (v7x)
    try:
        info = pltpu.get_tpu_info()
        phys = int(getattr(info, "vmem_capacity_bytes", phys))
    except Exception:
        pass
    cap = max(min(phys - 16 * 1024 * 1024, 110 * 1024 * 1024), 32 * 1024 * 1024)
    need = 16 * n_pad * n_pad + 8 * 1024 * 1024               # ~a_sl(bf16)+e,p(f32)+p(bf16)+slack
    return int(min(max(need, 32 * 1024 * 1024), cap))


def gcn_gat_forward(x, edge_index, params):
    n = x.shape[0]
    if edge_index.shape[1] == 0:                              # static shape check, like the torch code
        return jnp.zeros((n, OUTPUT_DIM), dtype=x.dtype)

    n_pad = ((n + 127) // 128) * 128                          # lane-align the node axis

    src, dst = edge_index[0], edge_index[1]

    # Per-node self-loop fill & D^{-1/2} — O(E)/O(N) scatters, no N^2 XLA pass.
    self_cnt = jnp.zeros((n_pad,), jnp.float32).at[dst].add((src == dst).astype(jnp.float32))
    diag_fill = jnp.where(self_cnt > 0, 0.0, 1.0)             # add self loop only where missing
    in_deg = jnp.zeros((n_pad,), jnp.float32).at[dst].add(1.0)
    deg = in_deg + diag_fill                                  # >= 1 everywhere (padded nodes -> 1)
    dis = jnp.where(deg > 0, jax.lax.rsqrt(deg), 0.0).reshape(n_pad, 1)

    # A_sl[i, j] = #edges j->i (+ forced self loop). The ONLY N^2 materialization outside the kernel;
    # built directly in bf16 (small integer counts are exact in bf16).
    idx = jnp.arange(n_pad)
    a_sl = (jnp.zeros((n_pad, n_pad), jnp.bfloat16)
            .at[dst, src].add(1.0)
            .at[idx, idx].add(diag_fill.astype(jnp.bfloat16)))

    # Zero-pad node features; coalesce the 6 weights into one bf16 slab and the
    # 6 biases + 2 attention vectors into one f32 slab (2 small DMAs instead of 14).
    x_pad = jnp.zeros((n_pad, IN_PAD), jnp.float32).at[:n, :INPUT_DIM].set(x.astype(jnp.float32))

    w1_pad = jnp.zeros((IN_PAD, HIDDEN_DIM), jnp.float32).at[:INPUT_DIM, :].set(params["w1"])
    w5_pad = jnp.zeros((HIDDEN_DIM, OUT_PAD), jnp.float32).at[:, :OUTPUT_DIM].set(params["w5"])
    w_slab = jnp.concatenate(
        [w1_pad, params["w2"], params["wg"], params["w3"], params["w4"], w5_pad],
        axis=1).astype(jnp.bfloat16)                          # (128, 6*128)

    b5_pad = jnp.zeros((HIDDEN_DIM,), jnp.float32).at[:OUTPUT_DIM].set(params["b5"])
    vec_slab = jnp.stack(
        [params["b1"], params["b2"], params["bg"], params["b3"], params["b4"], b5_pad,
         params["ag_src"].reshape(-1), params["ag_dst"].reshape(-1)],
        axis=0).astype(jnp.float32)                           # (8, 128)

    vmem_spec = pl.BlockSpec(memory_space=pltpu.MemorySpace.VMEM)
    out_pad = pl.pallas_call(
        _fused_gcn_gat_kernel,
        out_shape=jax.ShapeDtypeStruct((n_pad, OUT_PAD), jnp.float32),
        in_specs=[vmem_spec] * 5,
        out_specs=vmem_spec,
        compiler_params=pltpu.CompilerParams(vmem_limit_bytes=_vmem_limit_bytes(n_pad)),
    )(a_sl, dis, x_pad, w_slab, vec_slab)
    return out_pad[:n, :OUTPUT_DIM]


# ----------------------------- params ---------------------------------


def _glorot(key, shape):
    fan_in, fan_out = shape[0], shape[-1]
    limit = jnp.sqrt(6.0 / (fan_in + fan_out))
    return jax.random.uniform(key, shape, jnp.float32, -limit, limit)


def init_params(key):
    ks = jax.random.split(key, 8)
    z = lambda d: jnp.zeros((d,), jnp.float32)
    return {
        "w1": _glorot(ks[0], (INPUT_DIM, HIDDEN_DIM)), "b1": z(HIDDEN_DIM),
        "w2": _glorot(ks[1], (HIDDEN_DIM, HIDDEN_DIM)), "b2": z(HIDDEN_DIM),
        "wg": _glorot(ks[2], (HIDDEN_DIM, HIDDEN_DIM)),
        "ag_src": _glorot(ks[3], (1, HIDDEN_DIM)),
        "ag_dst": _glorot(ks[4], (HIDDEN_DIM, 1)),
        "bg": z(HIDDEN_DIM),
        "w3": _glorot(ks[5], (HIDDEN_DIM, HIDDEN_DIM)), "b3": z(HIDDEN_DIM),
        "w4": _glorot(ks[6], (HIDDEN_DIM, HIDDEN_DIM)), "b4": z(HIDDEN_DIM),
        "w5": _glorot(ks[7], (HIDDEN_DIM, OUTPUT_DIM)), "b5": z(OUTPUT_DIM),
    }


# --------------------------------- main --------------------------------------


if __name__ == "__main__":
    key = jax.random.PRNGKey(0)
    k_x, k_p = jax.random.split(key)

    n_nodes = 16
    x = jax.random.normal(k_x, (n_nodes, INPUT_DIM), jnp.float32)

    # Deterministic graph: undirected ring plus stride-3 chords (no self loops / duplicates).
    i = jnp.arange(n_nodes)
    src = jnp.concatenate([i, (i + 1) % n_nodes, i, (i + 3) % n_nodes])
    dst = jnp.concatenate([(i + 1) % n_nodes, i, (i + 3) % n_nodes, i])
    edge_index = jnp.stack([src, dst]).astype(jnp.int32)

    params = init_params(k_p)

    out = jax.block_until_ready(gcn_gat_forward(x, edge_index, params))

    assert out.shape == (n_nodes, OUTPUT_DIM), out.shape
    assert bool(jnp.all(jnp.isfinite(out)))
    # log_softmax rows must exponentiate-sum to 1.
    assert bool(jnp.allclose(jnp.exp(out).sum(axis=1), 1.0, atol=1e-4))

    print("KERNEL_OK")
</pallas_src>

<mosaic_0001>
module attributes {stable_mosaic.version = 11 : i64} {
  func.func @_fused_gcn_gat_kernel(%arg0: memref<128x128xbf16, #tpu.memory_space<vmem>>, %arg1: memref<128x1xf32, #tpu.memory_space<vmem>>, %arg2: memref<128x128xf32, #tpu.memory_space<vmem>>, %arg3: memref<128x768xbf16, #tpu.memory_space<vmem>>, %arg4: memref<8x128xf32, #tpu.memory_space<vmem>>, %arg5: memref<128x128xf32, #tpu.memory_space<vmem>>) attributes {dimension_semantics = [], scalar_prefetch = 0 : i64, scratch_operands = 0 : i64, tpu.core_type = #tpu.core_type<tc>} {
    %c0 = arith.constant 0 : index
    %c0_0 = arith.constant 0 : index
    %0 = vector.load %arg0[%c0, %c0_0] : memref<128x128xbf16, #tpu.memory_space<vmem>>, vector<128x128xbf16>
    %c0_1 = arith.constant 0 : index
    %c0_2 = arith.constant 0 : index
    %1 = vector.load %arg1[%c0_1, %c0_2] : memref<128x1xf32, #tpu.memory_space<vmem>>, vector<128x1xf32>
    %c0_3 = arith.constant 0 : index
    %c0_4 = arith.constant 0 : index
    %2 = vector.load %arg2[%c0_3, %c0_4] : memref<128x128xf32, #tpu.memory_space<vmem>>, vector<128x128xf32>
    %3 = arith.truncf %2 : vector<128x128xf32> to vector<128x128xbf16>
    %c0_5 = arith.constant 0 : index
    %c0_6 = arith.constant 0 : index
    %4 = vector.load %arg3[%c0_5, %c0_6] : memref<128x768xbf16, #tpu.memory_space<vmem>>, vector<128x128xbf16>
    %cst = arith.constant dense<0.000000e+00> : vector<128x128xf32>
    %5 = tpu.matmul %3, %4, %cst {dimension_numbers = #tpu.dot_dimension_numbers<[1], [0], [0], [1], [0, 0, 1, 1], [], []>} : vector<128x128xbf16>, vector<128x128xbf16>, vector<128x128xf32> -> vector<128x128xf32>
    %6 = vector.broadcast %1 : vector<128x1xf32> to vector<128x128xf32>
    %7 = arith.mulf %6, %5 : vector<128x128xf32>
    %8 = arith.truncf %7 : vector<128x128xf32> to vector<128x128xbf16>
    %cst_7 = arith.constant dense<0.000000e+00> : vector<128x128xf32>
    %9 = tpu.matmul %0, %8, %cst_7 {dimension_numbers = #tpu.dot_dimension_numbers<[1], [0], [0], [1], [0, 0, 1, 1], [], []>} : vector<128x128xbf16>, vector<128x128xbf16>, vector<128x128xf32> -> vector<128x128xf32>
    %10 = vector.broadcast %1 : vector<128x1xf32> to vector<128x128xf32>
    %11 = arith.mulf %10, %9 : vector<128x128xf32>
    %c0_8 = arith.constant 0 : index
    %c0_9 = arith.constant 0 : index
    %12 = vector.load %arg4[%c0_8, %c0_9] : memref<8x128xf32, #tpu.memory_space<vmem>>, vector<1x128xf32>
    %13 = vector.broadcast %12 : vector<1x128xf32> to vector<128x128xf32>
    %14 = arith.addf %11, %13 : vector<128x128xf32>
    %cst_10 = arith.constant 0.000000e+00 : f32
    %15 = vector.broadcast %cst_10 : f32 to vector<128x128xf32>
    %16 = arith.maximumf %14, %15 : vector<128x128xf32>
    %17 = arith.truncf %16 : vector<128x128xf32> to vector<128x128xbf16>
    %c0_11 = arith.constant 0 : index
    %c128 = arith.constant 128 : index
    %18 = vector.load %arg3[%c0_11, %c128] : memref<128x768xbf16, #tpu.memory_space<vmem>>, vector<128x128xbf16>
    %cst_12 = arith.constant dense<0.000000e+00> : vector<128x128xf32>
    %19 = tpu.matmul %17, %18, %cst_12 {dimension_numbers = #tpu.dot_dimension_numbers<[1], [0], [0], [1], [0, 0, 1, 1], [], []>} : vector<128x128xbf16>, vector<128x128xbf16>, vector<128x128xf32> -> vector<128x128xf32>
    %20 = vector.broadcast %1 : vector<128x1xf32> to vector<128x128xf32>
    %21 = arith.mulf %20, %19 : vector<128x128xf32>
    %22 = arith.truncf %21 : vector<128x128xf32> to vector<128x128xbf16>
    %cst_13 = arith.constant dense<0.000000e+00> : vector<128x128xf32>
    %23 = tpu.matmul %0, %22, %cst_13 {dimension_numbers = #tpu.dot_dimension_numbers<[1], [0], [0], [1], [0, 0, 1, 1], [], []>} : vector<128x128xbf16>, vector<128x128xbf16>, vector<128x128xf32> -> vector<128x128xf32>
    %24 = vector.broadcast %1 : vector<128x1xf32> to vector<128x128xf32>
    %25 = arith.mulf %24, %23 : vector<128x128xf32>
    %c1 = arith.constant 1 : index
    %c0_14 = arith.constant 0 : index
    %26 = vector.load %arg4[%c1, %c0_14] : memref<8x128xf32, #tpu.memory_space<vmem>>, vector<1x128xf32>
    %27 = vector.broadcast %26 : vector<1x128xf32> to vector<128x128xf32>
    %28 = arith.addf %25, %27 : vector<128x128xf32>
    %cst_15 = arith.constant 0.000000e+00 : f32
    %29 = vector.broadcast %cst_15 : f32 to vector<128x128xf32>
    %30 = arith.maximumf %28, %29 : vector<128x128xf32>
    %31 = arith.truncf %30 : vector<128x128xf32> to vector<128x128xbf16>
    %c0_16 = arith.constant 0 : index
    %c256 = arith.constant 256 : index
    %32 = vector.load %arg3[%c0_16, %c256] : memref<128x768xbf16, #tpu.memory_space<vmem>>, vector<128x128xbf16>
    %cst_17 = arith.constant dense<0.000000e+00> : vector<128x128xf32>
    %33 = tpu.matmul %31, %32, %cst_17 {dimension_numbers = #tpu.dot_dimension_numbers<[1], [0], [0], [1], [0, 0, 1, 1], [], []>} : vector<128x128xbf16>, vector<128x128xbf16>, vector<128x128xf32> -> vector<128x128xf32>
    %c6 = arith.constant 6 : index
    %c0_18 = arith.constant 0 : index
    %34 = vector.load %arg4[%c6, %c0_18] : memref<8x128xf32, #tpu.memory_space<vmem>>, vector<1x128xf32>
    %c7 = arith.constant 7 : index
    %c0_19 = arith.constant 0 : index
    %35 = vector.load %arg4[%c7, %c0_19] : memref<8x128xf32, #tpu.memory_space<vmem>>, vector<1x128xf32>
    %cst_20 = arith.constant dense<0.000000e+00> : vector<1x128xf32>
    %36 = tpu.matmul %34, %33, %cst_20 {dimension_numbers = #tpu.dot_dimension_numbers<[1], [1], [0], [0], [0, 0, 1, 0], [], []>} : vector<1x128xf32>, vector<128x128xf32>, vector<1x128xf32> -> vector<1x128xf32>
    %37 = vector.broadcast %35 : vector<1x128xf32> to vector<128x128xf32>
    %38 = arith.mulf %33, %37 : vector<128x128xf32>
    %cst_21 = arith.constant dense<0.000000e+00> : vector<128xf32>
    %39 = vector.multi_reduction <add>, %38, %cst_21 [1] : vector<128x128xf32> to vector<128xf32>
    %40 = vector.shape_cast %39 : vector<128xf32> to vector<128x1xf32>
    %41 = vector.broadcast %40 : vector<128x1xf32> to vector<128x128xf32>
    %42 = vector.broadcast %36 : vector<1x128xf32> to vector<128x128xf32>
    %43 = arith.addf %41, %42 : vector<128x128xf32>
    %cst_22 = arith.constant 0.000000e+00 : f32
    %44 = vector.broadcast %cst_22 : f32 to vector<128x128xf32>
    %45 = arith.cmpf ogt, %43, %44 : vector<128x128xf32>
    %cst_23 = arith.constant 2.000000e-01 : f32
    %46 = vector.broadcast %cst_23 : f32 to vector<128x128xf32>
    %47 = arith.mulf %46, %43 : vector<128x128xf32>
    %48 = arith.select %45, %43, %47 : vector<128x128xi1>, vector<128x128xf32>
    %cst_24 = arith.constant 0.000000e+00 : bf16
    %49 = vector.broadcast %cst_24 : bf16 to vector<128x128xbf16>
    %50 = arith.cmpf ogt, %0, %49 : vector<128x128xbf16>
    %cst_25 = arith.constant -1.000000e+30 : f32
    %51 = vector.broadcast %cst_25 : f32 to vector<128x128xf32>
    %52 = arith.select %50, %48, %51 : vector<128x128xi1>, vector<128x128xf32>
    %cst_26 = arith.constant dense<0xFF800000> : vector<128xf32>
    %53 = vector.multi_reduction <maximumf>, %52, %cst_26 [1] : vector<128x128xf32> to vector<128xf32>
    %54 = vector.shape_cast %53 : vector<128xf32> to vector<128x1xf32>
    %55 = vector.broadcast %54 : vector<128x1xf32> to vector<128x128xf32>
    %56 = arith.subf %52, %55 : vector<128x128xf32>
    %57 = math.exp %56 : vector<128x128xf32>
    %58 = arith.truncf %57 : vector<128x128xf32> to vector<128x128xbf16>
    %59 = arith.truncf %33 : vector<128x128xf32> to vector<128x128xbf16>
    %cst_27 = arith.constant dense<0.000000e+00> : vector<128x128xf32>
    %60 = tpu.matmul %58, %59, %cst_27 {dimension_numbers = #tpu.dot_dimension_numbers<[1], [0], [0], [1], [0, 0, 1, 1], [], []>} : vector<128x128xbf16>, vector<128x128xbf16>, vector<128x128xf32> -> vector<128x128xf32>
    %cst_28 = arith.constant dense<0.000000e+00> : vector<128xf32>
    %61 = vector.multi_reduction <add>, %57, %cst_28 [1] : vector<128x128xf32> to vector<128xf32>
    %62 = vector.shape_cast %61 : vector<128xf32> to vector<128x1xf32>
    %63 = tpu.reciprocal %62 {approx = true} : vector<128x1xf32> -> vector<128x1xf32>
    %64 = vector.broadcast %63 : vector<128x1xf32> to vector<128x128xf32>
    %65 = arith.mulf %60, %64 : vector<128x128xf32>
    %c2 = arith.constant 2 : index
    %c0_29 = arith.constant 0 : index
    %66 = vector.load %arg4[%c2, %c0_29] : memref<8x128xf32, #tpu.memory_space<vmem>>, vector<1x128xf32>
    %67 = vector.broadcast %66 : vector<1x128xf32> to vector<128x128xf32>
    %68 = arith.addf %65, %67 : vector<128x128xf32>
    %cst_30 = arith.constant 0.000000e+00 : f32
    %69 = vector.broadcast %cst_30 : f32 to vector<128x128xf32>
    %70 = arith.maximumf %68, %69 : vector<128x128xf32>
    %71 = arith.truncf %70 : vector<128x128xf32> to vector<128x128xbf16>
    %c0_31 = arith.constant 0 : index
    %c384 = arith.constant 384 : index
    %72 = vector.load %arg3[%c0_31, %c384] : memref<128x768xbf16, #tpu.memory_space<vmem>>, vector<128x128xbf16>
    %cst_32 = arith.constant dense<0.000000e+00> : vector<128x128xf32>
    %73 = tpu.matmul %71, %72, %cst_32 {dimension_numbers = #tpu.dot_dimension_numbers<[1], [0], [0], [1], [0, 0, 1, 1], [], []>} : vector<128x128xbf16>, vector<128x128xbf16>, vector<128x128xf32> -> vector<128x128xf32>
    %74 = vector.broadcast %1 : vector<128x1xf32> to vector<128x128xf32>
    %75 = arith.mulf %74, %73 : vector<128x128xf32>
    %76 = arith.truncf %75 : vector<128x128xf32> to vector<128x128xbf16>
    %cst_33 = arith.constant dense<0.000000e+00> : vector<128x128xf32>
    %77 = tpu.matmul %0, %76, %cst_33 {dimension_numbers = #tpu.dot_dimension_numbers<[1], [0], [0], [1], [0, 0, 1, 1], [], []>} : vector<128x128xbf16>, vector<128x128xbf16>, vector<128x128xf32> -> vector<128x128xf32>
    %78 = vector.broadcast %1 : vector<128x1xf32> to vector<128x128xf32>
    %79 = arith.mulf %78, %77 : vector<128x128xf32>
    %c3 = arith.constant 3 : index
    %c0_34 = arith.constant 0 : index
    %80 = vector.load %arg4[%c3, %c0_34] : memref<8x128xf32, #tpu.memory_space<vmem>>, vector<1x128xf32>
    %81 = vector.broadcast %80 : vector<1x128xf32> to vector<128x128xf32>
    %82 = arith.addf %79, %81 : vector<128x128xf32>
    %cst_35 = arith.constant 0.000000e+00 : f32
    %83 = vector.broadcast %cst_35 : f32 to vector<128x128xf32>
    %84 = arith.maximumf %82, %83 : vector<128x128xf32>
    %85 = arith.truncf %84 : vector<128x128xf32> to vector<128x128xbf16>
    %c0_36 = arith.constant 0 : index
    %c512 = arith.constant 512 : index
    %86 = vector.load %arg3[%c0_36, %c512] : memref<128x768xbf16, #tpu.memory_space<vmem>>, vector<128x128xbf16>
    %cst_37 = arith.constant dense<0.000000e+00> : vector<128x128xf32>
    %87 = tpu.matmul %85, %86, %cst_37 {dimension_numbers = #tpu.dot_dimension_numbers<[1], [0], [0], [1], [0, 0, 1, 1], [], []>} : vector<128x128xbf16>, vector<128x128xbf16>, vector<128x128xf32> -> vector<128x128xf32>
    %88 = vector.broadcast %1 : vector<128x1xf32> to vector<128x128xf32>
    %89 = arith.mulf %88, %87 : vector<128x128xf32>
    %90 = arith.truncf %89 : vector<128x128xf32> to vector<128x128xbf16>
    %cst_38 = arith.constant dense<0.000000e+00> : vector<128x128xf32>
    %91 = tpu.matmul %0, %90, %cst_38 {dimension_numbers = #tpu.dot_dimension_numbers<[1], [0], [0], [1], [0, 0, 1, 1], [], []>} : vector<128x128xbf16>, vector<128x128xbf16>, vector<128x128xf32> -> vector<128x128xf32>
    %92 = vector.broadcast %1 : vector<128x1xf32> to vector<128x128xf32>
    %93 = arith.mulf %92, %91 : vector<128x128xf32>
    %c4 = arith.constant 4 : index
    %c0_39 = arith.constant 0 : index
    %94 = vector.load %arg4[%c4, %c0_39] : memref<8x128xf32, #tpu.memory_space<vmem>>, vector<1x128xf32>
    %95 = vector.broadcast %94 : vector<1x128xf32> to vector<128x128xf32>
    %96 = arith.addf %93, %95 : vector<128x128xf32>
    %cst_40 = arith.constant 0.000000e+00 : f32
    %97 = vector.broadcast %cst_40 : f32 to vector<128x128xf32>
    %98 = arith.maximumf %96, %97 : vector<128x128xf32>
    %99 = arith.truncf %98 : vector<128x128xf32> to vector<128x128xbf16>
    %c0_41 = arith.constant 0 : index
    %c640 = arith.constant 640 : index
    %100 = vector.load %arg3[%c0_41, %c640] : memref<128x768xbf16, #tpu.memory_space<vmem>>, vector<128x128xbf16>
    %cst_42 = arith.constant dense<0.000000e+00> : vector<128x128xf32>
    %101 = tpu.matmul %99, %100, %cst_42 {dimension_numbers = #tpu.dot_dimension_numbers<[1], [0], [0], [1], [0, 0, 1, 1], [], []>} : vector<128x128xbf16>, vector<128x128xbf16>, vector<128x128xf32> -> vector<128x128xf32>
    %102 = vector.broadcast %1 : vector<128x1xf32> to vector<128x128xf32>
    %103 = arith.mulf %102, %101 : vector<128x128xf32>
    %104 = arith.truncf %103 : vector<128x128xf32> to vector<128x128xbf16>
    %cst_43 = arith.constant dense<0.000000e+00> : vector<128x128xf32>
    %105 = tpu.matmul %0, %104, %cst_43 {dimension_numbers = #tpu.dot_dimension_numbers<[1], [0], [0], [1], [0, 0, 1, 1], [], []>} : vector<128x128xbf16>, vector<128x128xbf16>, vector<128x128xf32> -> vector<128x128xf32>
    %106 = vector.broadcast %1 : vector<128x1xf32> to vector<128x128xf32>
    %107 = arith.mulf %106, %105 : vector<128x128xf32>
    %c5 = arith.constant 5 : index
    %c0_44 = arith.constant 0 : index
    %108 = vector.load %arg4[%c5, %c0_44] : memref<8x128xf32, #tpu.memory_space<vmem>>, vector<1x128xf32>
    %109 = vector.broadcast %108 : vector<1x128xf32> to vector<128x128xf32>
    %110 = arith.addf %107, %109 : vector<128x128xf32>
    %111 = tpu.iota {dimensions = array<i32: 1>} : vector<128x128xi32>
    %c5_i32 = arith.constant 5 : i32
    %112 = vector.broadcast %c5_i32 : i32 to vector<128x128xi32>
    %113 = arith.cmpi slt, %111, %112 : vector<128x128xi32>
    %cst_45 = arith.constant -1.000000e+30 : f32
    %114 = vector.broadcast %cst_45 : f32 to vector<128x128xf32>
    %115 = arith.select %113, %110, %114 : vector<128x128xi1>, vector<128x128xf32>
    %cst_46 = arith.constant dense<0xFF800000> : vector<128xf32>
    %116 = vector.multi_reduction <maximumf>, %115, %cst_46 [1] : vector<128x128xf32> to vector<128xf32>
    %117 = vector.shape_cast %116 : vector<128xf32> to vector<128x1xf32>
    %118 = vector.broadcast %117 : vector<128x1xf32> to vector<128x128xf32>
    %119 = arith.subf %115, %118 : vector<128x128xf32>
    %120 = math.exp %119 : vector<128x128xf32>
    %cst_47 = arith.constant dense<0.000000e+00> : vector<128xf32>
    %121 = vector.multi_reduction <add>, %120, %cst_47 [1] : vector<128x128xf32> to vector<128xf32>
    %122 = vector.shape_cast %121 : vector<128xf32> to vector<128x1xf32>
    %123 = math.log %122 : vector<128x1xf32>
    %124 = arith.addf %123, %117 : vector<128x1xf32>
    %125 = vector.broadcast %124 : vector<128x1xf32> to vector<128x128xf32>
    %126 = arith.subf %110, %125 : vector<128x128xf32>
    %c0_48 = arith.constant 0 : index
    %c0_49 = arith.constant 0 : index
    %127 = vector.load %arg5[%c0_48, %c0_49] : memref<128x128xf32, #tpu.memory_space<vmem>>, vector<128x128xf32>
    tpu.vector_store %arg5[%c0_48, %c0_49], %126 {strides = array<i32>} : memref<128x128xf32, #tpu.memory_space<vmem>>, vector<128x128xf32>,
    return
  }
}

</mosaic_0001>

<llo_original>
// kernel: tpu_custom_call.1
$region0: #{tpu_custom_call.1}
  #allocation0 [shape = 'u32[]', space=smem, size = 0x4, offset = 0x4, fixed_abs, tag = 'smem constant byte address 0x4 - core index']
  #allocation1 [shape = 'u32[72,128]{1,0:T(1,128)}', space=vmem, size = 0x9000, scoped, tag = 'internal scratch']
  %s0 = inlined_call_operand.hbm [shape: bf16[128,128], index: 0, kind: input, shape index: {}]
  %s1 = inlined_call_operand.vmem [shape: f32[128,1], index: 1, kind: input, shape index: {}]
  %s2 = inlined_call_operand.vmem [shape: f32[128,128], index: 2, kind: input, shape index: {}]
  %s3 = inlined_call_operand.hbm [shape: bf16[128,768], index: 3, kind: input, shape index: {}]
  %s4 = inlined_call_operand.hbm [shape: f32[8,128], index: 4, kind: input, shape index: {}]
  %s5 = inlined_call_operand.hbm [shape: f32[128,128], index: 5, kind: output, shape index: {}]
  %s6 = sld [smem:[#allocation0]]
  $region42: #{tpu_custom_call.1} parent=0
    _
  %s8 = ssub.s32 1, %s6
  %s9 = scalar_select 0, %s8, %s6
  $region1: #{tpu_custom_call.1} parent=0
    #allocation2 [shape = 'u8[32768]{0}', space=vmem, size = 0x8000, scoped, tag = 'input window, operand 0, single buffered']
    #allocation3 [shape = 's32[1]{0}', space=sflag, size = 0x4, scoped, tag = 'scoped memory for tpu_custom_call.1']
    #allocation4 [shape = 's32[1]{0}', space=sflag, size = 0x4, scoped, tag = 'scoped memory for tpu_custom_call.1']
    #allocation5 [shape = 'u8[196608]{0}', space=vmem, size = 0x30000, scoped, tag = 'input window, operand 3, single buffered']
    #allocation6 [shape = 's32[1]{0}', space=sflag, size = 0x4, scoped, tag = 'scoped memory for tpu_custom_call.1']
    #allocation7 [shape = 'u8[4096]{0}', space=vmem, size = 0x1000, scoped, tag = 'input window, operand 4, single buffered']
    #allocation8 [shape = 'u8[65536]{0}', space=vmem, size = 0x10000, scoped, tag = 'output window, operand 0, single buffered']
    %10 = vsyncpa [#allocation3], 0
    %11 = vsyncpa [#allocation6], 0
    %12 = vsyncpa [#allocation4], 0
    // Predicated region
    $region2: #{tpu_custom_call.1} parent=1 // pred_check
      _
    $region3: #{tpu_custom_call.1} parent=1 // pred_check_branch
      %14 = sbr.rel (0) target = $region5
    $region4: #{tpu_custom_call.1} parent=1 // pred_region
      %16 = vsyncadd [#allocation3], 0
      %s17 = sshll.u32 %s0, 4
      %s18 = int_to_ptr.hbm [resolvable:$true] %s17
      %s19 = sshll.u32 [#allocation2], 4
      %s20 = int_to_ptr.vmem [resolvable:$true] %s19
      %25 = dma.hbm_to_vmem [thread:$0]  %s18, 1024, %s20, [#allocation3], 64, 64, 4
    $region5: #{tpu_custom_call.1} parent=1 // pred_fallthru
      _
    // Predicated region
    $region6: #{tpu_custom_call.1} parent=1 // pred_check
      _
    $region7: #{tpu_custom_call.1} parent=1 // pred_check_branch
      %27 = sbr.rel (0) target = $region9
    $region8: #{tpu_custom_call.1} parent=1 // pred_region
      _
    $region9: #{tpu_custom_call.1} parent=1 // pred_fallthru
      _
    // Predicated region
    $region10: #{tpu_custom_call.1} parent=1 // pred_check
      _
    $region11: #{tpu_custom_call.1} parent=1 // pred_check_branch
      %29 = sbr.rel (0) target = $region13
    $region12: #{tpu_custom_call.1} parent=1 // pred_region
      _
    $region13: #{tpu_custom_call.1} parent=1 // pred_fallthru
      _
    // Predicated region
    $region14: #{tpu_custom_call.1} parent=1 // pred_check
      _
    $region15: #{tpu_custom_call.1} parent=1 // pred_check_branch
      %31 = sbr.rel (0) target = $region17
    $region16: #{tpu_custom_call.1} parent=1 // pred_region
      %33 = vsyncadd [#allocation6], 0
      %s34 = sshll.u32 %s3, 4
      %s35 = int_to_ptr.hbm [resolvable:$true] %s34
      %s36 = sshll.u32 [#allocation5], 4
      %s37 = int_to_ptr.vmem [resolvable:$true] %s36
      %42 = dma.hbm_to_vmem [thread:$0]  %s35, 6144, %s37, [#allocation6], 384, 384, 24
    $region17: #{tpu_custom_call.1} parent=1 // pred_fallthru
      _
    // Predicated region
    $region18: #{tpu_custom_call.1} parent=1 // pred_check
      _
    $region19: #{tpu_custom_call.1} parent=1 // pred_check_branch
      %44 = sbr.rel (0) target = $region21
    $region20: #{tpu_custom_call.1} parent=1 // pred_region
      %46 = vsyncadd [#allocation6], 0
      %s48 = sshll.u32 %s4, 4
      %s49 = int_to_ptr.hbm [resolvable:$true] %s48
      %s50 = sshll.u32 [#allocation7], 4
      %s51 = int_to_ptr.vmem [resolvable:$true] %s50
      %53 = dma.hbm_to_vmem [thread:$0]  %s49, 128, %s51, [#allocation6]
    $region21: #{tpu_custom_call.1} parent=1 // pred_fallthru
      _
    // Predicated region
    $region22: #{tpu_custom_call.1} parent=1 // pred_check
      _
    $region23: #{tpu_custom_call.1} parent=1 // pred_check_branch
      %55 = sbr.rel (0) target = $region25
    $region24: #{tpu_custom_call.1} parent=1 // pred_region
      %57 = dma.done [#allocation3], 1024
    $region25: #{tpu_custom_call.1} parent=1 // pred_fallthru
      _
    // Predicated region
    $region26: #{tpu_custom_call.1} parent=1 // pred_check
      _
    $region27: #{tpu_custom_call.1} parent=1 // pred_check_branch
      %59 = sbr.rel (0) target = $region29
    $region28: #{tpu_custom_call.1} parent=1 // pred_region
      %61 = dma.done [#allocation6], 6144
    $region29: #{tpu_custom_call.1} parent=1 // pred_fallthru
      _
    // Predicated region
    $region30: #{tpu_custom_call.1} parent=1 // pred_check
      _
    $region31: #{tpu_custom_call.1} parent=1 // pred_check_branch
      %63 = sbr.rel (0) target = $region33
    $region32: #{tpu_custom_call.1} parent=1 // pred_region
      %65 = dma.done [#allocation6], 128
    $region33: #{tpu_custom_call.1} parent=1 // pred_fallthru
      _
    %v66 = vld [vmem:[#allocation2] sm:$0xf]
    %v67 = vld [vmem:[#allocation2 + $0x4] sm:$0xf]
    %v68 = vld [vmem:[#allocation2 + $0x8] sm:$0xf]
    %v69 = vld [vmem:[#allocation2 + $0xc] sm:$0xf]
    %v70 = vld [vmem:[#allocation2 + $0x10] sm:$0xf]
    %v71 = vld [vmem:[#allocation2 + $0x14] sm:$0xf]
    %v72 = vld [vmem:[#allocation2 + $0x18] sm:$0xf]
    %v73 = vld [vmem:[#allocation2 + $0x1c] sm:$0xf]
    %v74 = vld [vmem:[#allocation2 + $0x20] sm:$0xf]
    %v75 = vld [vmem:[#allocation2 + $0x24] sm:$0xf]
    %v76 = vld [vmem:[#allocation2 + $0x28] sm:$0xf]
    %v77 = vld [vmem:[#allocation2 + $0x2c] sm:$0xf]
    %v78 = vld [vmem:[#allocation2 + $0x30] sm:$0xf]
    %v79 = vld [vmem:[#allocation2 + $0x34] sm:$0xf]
    %v80 = vld [vmem:[#allocation2 + $0x38] sm:$0xf]
    %v81 = vld [vmem:[#allocation2 + $0x3c] sm:$0xf]
    %v82 = vld [vmem:[%s1] sm:$0xff]
    %v83 = vld [vmem:[%s1 + $0x8] sm:$0xff]
    %v84 = vld [vmem:[%s1 + $0x10] sm:$0xff]
    %v85 = vld [vmem:[%s1 + $0x18] sm:$0xff]
    %v86 = vld [vmem:[%s1 + $0x20] sm:$0xff]
    %v87 = vld [vmem:[%s1 + $0x28] sm:$0xff]
    %v88 = vld [vmem:[%s1 + $0x30] sm:$0xff]
    %v89 = vld [vmem:[%s1 + $0x38] sm:$0xff]
    %v90 = vld [vmem:[%s1 + $0x40] sm:$0xff]
    %v91 = vld [vmem:[%s1 + $0x48] sm:$0xff]
    %v92 = vld [vmem:[%s1 + $0x50] sm:$0xff]
    %v93 = vld [vmem:[%s1 + $0x58] sm:$0xff]
    %v94 = vld [vmem:[%s1 + $0x60] sm:$0xff]
    %v95 = vld [vmem:[%s1 + $0x68] sm:$0xff]
    %v96 = vld [vmem:[%s1 + $0x70] sm:$0xff]
    %v97 = vld [vmem:[%s1 + $0x78] sm:$0xff]
    %v98 = vld [vmem:[%s2] sm:$0xff]
    %v99 = vld [vmem:[%s2 + $0x8] sm:$0xff]
    %v100 = vld [vmem:[%s2 + $0x10] sm:$0xff]
    %v101 = vld [vmem:[%s2 + $0x18] sm:$0xff]
    %v102 = vld [vmem:[%s2 + $0x20] sm:$0xff]
    %v103 = vld [vmem:[%s2 + $0x28] sm:$0xff]
    %v104 = vld [vmem:[%s2 + $0x30] sm:$0xff]
    %v105 = vld [vmem:[%s2 + $0x38] sm:$0xff]
    %v106 = vld [vmem:[%s2 + $0x40] sm:$0xff]
    %v107 = vld [vmem:[%s2 + $0x48] sm:$0xff]
    %v108 = vld [vmem:[%s2 + $0x50] sm:$0xff]
    %v109 = vld [vmem:[%s2 + $0x58] sm:$0xff]
    %v110 = vld [vmem:[%s2 + $0x60] sm:$0xff]
    %v111 = vld [vmem:[%s2 + $0x68] sm:$0xff]
    %v112 = vld [vmem:[%s2 + $0x70] sm:$0xff]
    %v113 = vld [vmem:[%s2 + $0x78] sm:$0xff]
    %v114 = vpack.c.bf16 %v99, %v98
    %v115 = vpack.c.bf16 %v101, %v100
    %v116 = vpack.c.bf16 %v103, %v102
    %v117 = vpack.c.bf16 %v105, %v104
    %v118 = vpack.c.bf16 %v107, %v106
    %v119 = vpack.c.bf16 %v109, %v108
    %v120 = vpack.c.bf16 %v111, %v110
    %v121 = vpack.c.bf16 %v113, %v112
    %v122 = vld [vmem:[#allocation5] sm:$0xf]
    %v123 = vld [vmem:[#allocation5 + $0x18] sm:$0xf]
    %v124 = vld [vmem:[#allocation5 + $0x30] sm:$0xf]
    %v125 = vld [vmem:[#allocation5 + $0x48] sm:$0xf]
    %v126 = vld [vmem:[#allocation5 + $0x60] sm:$0xf]
    %v127 = vld [vmem:[#allocation5 + $0x78] sm:$0xf]
    %v128 = vld [vmem:[#allocation5 + $0x90] sm:$0xf]
    %v129 = vld [vmem:[#allocation5 + $0xa8] sm:$0xf]
    %v130 = vld [vmem:[#allocation5 + $0xc0] sm:$0xf]
    %v131 = vld [vmem:[#allocation5 + $0xd8] sm:$0xf]
    %v132 = vld [vmem:[#allocation5 + $0xf0] sm:$0xf]
    %v133 = vld [vmem:[#allocation5 + $0x108] sm:$0xf]
    %v134 = vld [vmem:[#allocation5 + $0x120] sm:$0xf]
    %v135 = vld [vmem:[#allocation5 + $0x138] sm:$0xf]
    %v136 = vld [vmem:[#allocation5 + $0x150] sm:$0xf]
    %v137 = vld [vmem:[#allocation5 + $0x168] sm:$0xf]
    %v154 = vunpack.c.l.b16 %v122
    %v155 = vunpack.c.l.b16 %v123
    %v156 = vunpack.c.l.b16 %v124
    %v157 = vunpack.c.l.b16 %v125
    %v158 = vunpack.c.l.b16 %v126
    %v159 = vunpack.c.l.b16 %v127
    %v160 = vunpack.c.l.b16 %v128
    %v161 = vunpack.c.l.b16 %v129
    %v162 = vunpack.c.l.b16 %v130
    %v163 = vunpack.c.l.b16 %v131
    %v164 = vunpack.c.l.b16 %v132
    %v165 = vunpack.c.l.b16 %v133
    %v166 = vunpack.c.l.b16 %v134
    %v167 = vunpack.c.l.b16 %v135
    %v168 = vunpack.c.l.b16 %v136
    %v169 = vunpack.c.l.b16 %v137
    %v170 = vpack.c.b16 %v155, %v154
    %v171 = vpack.c.b16 %v157, %v156
    %v172 = vpack.c.b16 %v159, %v158
    %v173 = vpack.c.b16 %v161, %v160
    %v174 = vpack.c.b16 %v163, %v162
    %v175 = vpack.c.b16 %v165, %v164
    %v176 = vpack.c.b16 %v167, %v166
    %v177 = vpack.c.b16 %v169, %v168
    %186 = vmatpush.bf16.msra.mxu0 %v177
    %187 = vmatpush.bf16.msra.mxu0 %v176
    %188 = vmatpush.bf16.msra.mxu0 %v175
    %189 = vmatpush.bf16.msra.mxu0 %v174
    %190 = vmatpush.bf16.msra.mxu0 %v173
    %191 = vmatpush.bf16.msra.mxu0 %v172
    %192 = vmatpush.bf16.msra.mxu0 %v171
    %193 = vmatpush.bf16.msra.mxu0 %v170
    %194 = vmatmul.bf16.gmra.mxu0 %v114
    %v195 = vpop.f32.mrf.mxu0
    %v196 = vadd.f32 0.0, %v195
    %v197 = vpop.f32.mrf.mxu0
    %v198 = vadd.f32 0.0, %v197
    %199 = vmatmul.bf16.gmra.mxu0 %v115
    %v200 = vpop.f32.mrf.mxu0
    %v201 = vadd.f32 0.0, %v200
    %v202 = vpop.f32.mrf.mxu0
    %v203 = vadd.f32 0.0, %v202
    %204 = vmatmul.bf16.gmra.mxu0 %v116
    %v205 = vpop.f32.mrf.mxu0
    %v206 = vadd.f32 0.0, %v205
    %v207 = vpop.f32.mrf.mxu0
    %v208 = vadd.f32 0.0, %v207
    %209 = vmatmul.bf16.gmra.mxu0 %v117
    %v210 = vpop.f32.mrf.mxu0
    %v211 = vadd.f32 0.0, %v210
    %v212 = vpop.f32.mrf.mxu0
    %v213 = vadd.f32 0.0, %v212
    %214 = vmatmul.bf16.gmra.mxu0 %v118
    %v215 = vpop.f32.mrf.mxu0
    %v216 = vadd.f32 0.0, %v215
    %v217 = vpop.f32.mrf.mxu0
    %v218 = vadd.f32 0.0, %v217
    %219 = vmatmul.bf16.gmra.mxu0 %v119
    %v220 = vpop.f32.mrf.mxu0
    %v221 = vadd.f32 0.0, %v220
    %v222 = vpop.f32.mrf.mxu0
    %v223 = vadd.f32 0.0, %v222
    %224 = vmatmul.bf16.gmra.mxu0 %v120
    %v225 = vpop.f32.mrf.mxu0
    %v226 = vadd.f32 0.0, %v225
    %v227 = vpop.f32.mrf.mxu0
    %v228 = vadd.f32 0.0, %v227
    %229 = vmatmul.bf16.gmra.mxu0 %v121
    %v230 = vpop.f32.mrf.mxu0
    %v231 = vadd.f32 0.0, %v230
    %v232 = vpop.f32.mrf.mxu0
    %v233 = vadd.f32 0.0, %v232
    %234 = vdwg.mxu0
    %236 = vset.pattern.permute.xlu0 0
    %237 = vperm.xlu0 %236, %v82
    %v238 = vpop.permute.xlu0 %237
    %241 = vset.pattern.permute.xlu0 0
    %242 = vperm.xlu0 %241, %v83
    %v243 = vpop.permute.xlu0 %242
    %246 = vset.pattern.permute.xlu0 0
    %247 = vperm.xlu0 %246, %v84
    %v248 = vpop.permute.xlu0 %247
    %251 = vset.pattern.permute.xlu0 0
    %252 = vperm.xlu0 %251, %v85
    %v253 = vpop.permute.xlu0 %252
    %256 = vset.pattern.permute.xlu0 0
    %257 = vperm.xlu0 %256, %v86
    %v258 = vpop.permute.xlu0 %257
    %261 = vset.pattern.permute.xlu0 0
    %262 = vperm.xlu0 %261, %v87
    %v263 = vpop.permute.xlu0 %262
    %266 = vset.pattern.permute.xlu0 0
    %267 = vperm.xlu0 %266, %v88
    %v268 = vpop.permute.xlu0 %267
    %271 = vset.pattern.permute.xlu0 0
    %272 = vperm.xlu0 %271, %v89
    %v273 = vpop.permute.xlu0 %272
    %276 = vset.pattern.permute.xlu0 0
    %277 = vperm.xlu0 %276, %v90
    %v278 = vpop.permute.xlu0 %277
    %281 = vset.pattern.permute.xlu0 0
    %282 = vperm.xlu0 %281, %v91
    %v283 = vpop.permute.xlu0 %282
    %286 = vset.pattern.permute.xlu0 0
    %287 = vperm.xlu0 %286, %v92
    %v288 = vpop.permute.xlu0 %287
    %291 = vset.pattern.permute.xlu0 0
    %292 = vperm.xlu0 %291, %v93
    %v293 = vpop.permute.xlu0 %292
    %296 = vset.pattern.permute.xlu0 0
    %297 = vperm.xlu0 %296, %v94
    %v298 = vpop.permute.xlu0 %297
    %301 = vset.pattern.permute.xlu0 0
    %302 = vperm.xlu0 %301, %v95
    %v303 = vpop.permute.xlu0 %302
    %306 = vset.pattern.permute.xlu0 0
    %307 = vperm.xlu0 %306, %v96
    %v308 = vpop.permute.xlu0 %307
    %311 = vset.pattern.permute.xlu0 0
    %312 = vperm.xlu0 %311, %v97
    %v313 = vpop.permute.xlu0 %312
    %v315 = vmul.f32 %v238, %v196
    %v316 = vmul.f32 %v243, %v198
    %v317 = vmul.f32 %v248, %v201
    %v318 = vmul.f32 %v253, %v203
    %v319 = vmul.f32 %v258, %v206
    %v320 = vmul.f32 %v263, %v208
    %v321 = vmul.f32 %v268, %v211
    %v322 = vmul.f32 %v273, %v213
    %v323 = vmul.f32 %v278, %v216
    %v324 = vmul.f32 %v283, %v218
    %v325 = vmul.f32 %v288, %v221
    %v326 = vmul.f32 %v293, %v223
    %v327 = vmul.f32 %v298, %v226
    %v328 = vmul.f32 %v303, %v228
    %v329 = vmul.f32 %v308, %v231
    %v330 = vmul.f32 %v313, %v233
    %v331 = vpack.c.bf16 %v316, %v315
    %v332 = vpack.c.bf16 %v318, %v317
    %v333 = vpack.c.bf16 %v320, %v319
    %v334 = vpack.c.bf16 %v322, %v321
    %v335 = vpack.c.bf16 %v324, %v323
    %v336 = vpack.c.bf16 %v326, %v325
    %v337 = vpack.c.bf16 %v328, %v327
    %v338 = vpack.c.bf16 %v330, %v329
    %v355 = vunpack.c.l.b16 %v66
    %v356 = vunpack.c.l.b16 %v67
    %v357 = vunpack.c.l.b16 %v68
    %v358 = vunpack.c.l.b16 %v69
    %v359 = vunpack.c.l.b16 %v70
    %v360 = vunpack.c.l.b16 %v71
    %v361 = vunpack.c.l.b16 %v72
    %v362 = vunpack.c.l.b16 %v73
    %v363 = vunpack.c.l.b16 %v74
    %v364 = vunpack.c.l.b16 %v75
    %v365 = vunpack.c.l.b16 %v76
    %v366 = vunpack.c.l.b16 %v77
    %v367 = vunpack.c.l.b16 %v78
    %v368 = vunpack.c.l.b16 %v79
    %v369 = vunpack.c.l.b16 %v80
    %v370 = vunpack.c.l.b16 %v81
    %v371 = vpack.c.b16 %v356, %v355
    %v372 = vpack.c.b16 %v358, %v357
    %v373 = vpack.c.b16 %v360, %v359
    %v374 = vpack.c.b16 %v362, %v361
    %v375 = vpack.c.b16 %v364, %v363
    %v376 = vpack.c.b16 %v366, %v365
    %v377 = vpack.c.b16 %v368, %v367
    %v378 = vpack.c.b16 %v370, %v369
    %387 = vmatpush.bf16.msra.mxu0 %v338
    %388 = vmatpush.bf16.msra.mxu0 %v337
    %389 = vmatpush.bf16.msra.mxu0 %v336
    %390 = vmatpush.bf16.msra.mxu0 %v335
    %391 = vmatpush.bf16.msra.mxu0 %v334
    %392 = vmatpush.bf16.msra.mxu0 %v333
    %393 = vmatpush.bf16.msra.mxu0 %v332
    %394 = vmatpush.bf16.msra.mxu0 %v331
    %395 = vmatmul.bf16.gmra.mxu0 %v371
    %v396 = vpop.f32.mrf.mxu0
    %v397 = vadd.f32 0.0, %v396
    %v398 = vpop.f32.mrf.mxu0
    %v399 = vadd.f32 0.0, %v398
    %400 = vmatmul.bf16.gmra.mxu0 %v372
    %v401 = vpop.f32.mrf.mxu0
    %v402 = vadd.f32 0.0, %v401
    %v403 = vpop.f32.mrf.mxu0
    %v404 = vadd.f32 0.0, %v403
    %405 = vmatmul.bf16.gmra.mxu0 %v373
    %v406 = vpop.f32.mrf.mxu0
    %v407 = vadd.f32 0.0, %v406
    %v408 = vpop.f32.mrf.mxu0
    %v409 = vadd.f32 0.0, %v408
    %410 = vmatmul.bf16.gmra.mxu0 %v374
    %v411 = vpop.f32.mrf.mxu0
    %v412 = vadd.f32 0.0, %v411
    %v413 = vpop.f32.mrf.mxu0
    %v414 = vadd.f32 0.0, %v413
    %415 = vmatmul.bf16.gmra.mxu0 %v375
    %v416 = vpop.f32.mrf.mxu0
    %v417 = vadd.f32 0.0, %v416
    %v418 = vpop.f32.mrf.mxu0
    %v419 = vadd.f32 0.0, %v418
    %420 = vmatmul.bf16.gmra.mxu0 %v376
    %v421 = vpop.f32.mrf.mxu0
    %v422 = vadd.f32 0.0, %v421
    %v423 = vpop.f32.mrf.mxu0
    %v424 = vadd.f32 0.0, %v423
    %425 = vmatmul.bf16.gmra.mxu0 %v377
    %v426 = vpop.f32.mrf.mxu0
    %v427 = vadd.f32 0.0, %v426
    %v428 = vpop.f32.mrf.mxu0
    %v429 = vadd.f32 0.0, %v428
    %430 = vmatmul.bf16.gmra.mxu0 %v378
    %v431 = vpop.f32.mrf.mxu0
    %v432 = vadd.f32 0.0, %v431
    %v433 = vpop.f32.mrf.mxu0
    %v434 = vadd.f32 0.0, %v433
    %435 = vdwg.mxu0
    %v436 = vmul.f32 %v238, %v397
    %v437 = vmul.f32 %v243, %v399
    %v438 = vmul.f32 %v248, %v402
    %v439 = vmul.f32 %v253, %v404
    %v440 = vmul.f32 %v258, %v407
    %v441 = vmul.f32 %v263, %v409
    %v442 = vmul.f32 %v268, %v412
    %v443 = vmul.f32 %v273, %v414
    %v444 = vmul.f32 %v278, %v417
    %v445 = vmul.f32 %v283, %v419
    %v446 = vmul.f32 %v288, %v422
    %v447 = vmul.f32 %v293, %v424
    %v448 = vmul.f32 %v298, %v427
    %v449 = vmul.f32 %v303, %v429
    %v450 = vmul.f32 %v308, %v432
    %v451 = vmul.f32 %v313, %v434
    %v452 = vld [vmem:[#allocation7] sm:$0x1]
    %v453 = vperm.slane %v452, 0
    %v454 = vadd.f32 %v436, %v453
    %v455 = vadd.f32 %v437, %v453
    %v456 = vadd.f32 %v438, %v453
    %v457 = vadd.f32 %v439, %v453
    %v458 = vadd.f32 %v440, %v453
    %v459 = vadd.f32 %v441, %v453
    %v460 = vadd.f32 %v442, %v453
    %v461 = vadd.f32 %v443, %v453
    %v462 = vadd.f32 %v444, %v453
    %v463 = vadd.f32 %v445, %v453
    %v464 = vadd.f32 %v446, %v453
    %v465 = vadd.f32 %v447, %v453
    %v466 = vadd.f32 %v448, %v453
    %v467 = vadd.f32 %v449, %v453
    %v468 = vadd.f32 %v450, %v453
    %v469 = vadd.f32 %v451, %v453
    %v470 = vmax.f32 %v454, 0.0
    %v471 = vmax.f32 %v455, 0.0
    %v472 = vmax.f32 %v456, 0.0
    %v473 = vmax.f32 %v457, 0.0
    %v474 = vmax.f32 %v458, 0.0
    %v475 = vmax.f32 %v459, 0.0
    %v476 = vmax.f32 %v460, 0.0
    %v477 = vmax.f32 %v461, 0.0
    %v478 = vmax.f32 %v462, 0.0
    %v479 = vmax.f32 %v463, 0.0
    %v480 = vmax.f32 %v464, 0.0
    %v481 = vmax.f32 %v465, 0.0
    %v482 = vmax.f32 %v466, 0.0
    %v483 = vmax.f32 %v467, 0.0
    %v484 = vmax.f32 %v468, 0.0
    %v485 = vmax.f32 %v469, 0.0
    %v486 = vpack.c.bf16 %v471, %v470
    %v487 = vpack.c.bf16 %v473, %v472
    %v488 = vpack.c.bf16 %v475, %v474
    %v489 = vpack.c.bf16 %v477, %v476
    %v490 = vpack.c.bf16 %v479, %v478
    %v491 = vpack.c.bf16 %v481, %v480
    %v492 = vpack.c.bf16 %v483, %v482
    %v493 = vpack.c.bf16 %v485, %v484
    %v494 = vld [vmem:[#allocation5 + $0x4] sm:$0xf]
    %v495 = vld [vmem:[#allocation5 + $0x1c] sm:$0xf]
    %v496 = vld [vmem:[#allocation5 + $0x34] sm:$0xf]
    %v497 = vld [vmem:[#allocation5 + $0x4c] sm:$0xf]
    %v498 = vld [vmem:[#allocation5 + $0x64] sm:$0xf]
    %v499 = vld [vmem:[#allocation5 + $0x7c] sm:$0xf]
    %v500 = vld [vmem:[#allocation5 + $0x94] sm:$0xf]
    %v501 = vld [vmem:[#allocation5 + $0xac] sm:$0xf]
    %v502 = vld [vmem:[#allocation5 + $0xc4] sm:$0xf]
    %v503 = vld [vmem:[#allocation5 + $0xdc] sm:$0xf]
    %v504 = vld [vmem:[#allocation5 + $0xf4] sm:$0xf]
    %v505 = vld [vmem:[#allocation5 + $0x10c] sm:$0xf]
    %v506 = vld [vmem:[#allocation5 + $0x124] sm:$0xf]
    %v507 = vld [vmem:[#allocation5 + $0x13c] sm:$0xf]
    %v508 = vld [vmem:[#allocation5 + $0x154] sm:$0xf]
    %v509 = vld [vmem:[#allocation5 + $0x16c] sm:$0xf]
    %v526 = vunpack.c.l.b16 %v494
    %v527 = vunpack.c.l.b16 %v495
    %v528 = vunpack.c.l.b16 %v496
    %v529 = vunpack.c.l.b16 %v497
    %v530 = vunpack.c.l.b16 %v498
    %v531 = vunpack.c.l.b16 %v499
    %v532 = vunpack.c.l.b16 %v500
    %v533 = vunpack.c.l.b16 %v501
    %v534 = vunpack.c.l.b16 %v502
    %v535 = vunpack.c.l.b16 %v503
    %v536 = vunpack.c.l.b16 %v504
    %v537 = vunpack.c.l.b16 %v505
    %v538 = vunpack.c.l.b16 %v506
    %v539 = vunpack.c.l.b16 %v507
    %v540 = vunpack.c.l.b16 %v508
    %v541 = vunpack.c.l.b16 %v509
    %v542 = vpack.c.b16 %v527, %v526
    %v543 = vpack.c.b16 %v529, %v528
    %v544 = vpack.c.b16 %v531, %v530
    %v545 = vpack.c.b16 %v533, %v532
    %v546 = vpack.c.b16 %v535, %v534
    %v547 = vpack.c.b16 %v537, %v536
    %v548 = vpack.c.b16 %v539, %v538
    %v549 = vpack.c.b16 %v541, %v540
    %558 = vmatpush.bf16.msra.mxu0 %v549
    %559 = vmatpush.bf16.msra.mxu0 %v548
    %560 = vmatpush.bf16.msra.mxu0 %v547
    %561 = vmatpush.bf16.msra.mxu0 %v546
    %562 = vmatpush.bf16.msra.mxu0 %v545
    %563 = vmatpush.bf16.msra.mxu0 %v544
    %564 = vmatpush.bf16.msra.mxu0 %v543
    %565 = vmatpush.bf16.msra.mxu0 %v542
    %566 = vmatmul.bf16.gmra.mxu0 %v486
    %v567 = vpop.f32.mrf.mxu0
    %v568 = vadd.f32 0.0, %v567
    %v569 = vpop.f32.mrf.mxu0
    %v570 = vadd.f32 0.0, %v569
    %571 = vmatmul.bf16.gmra.mxu0 %v487
    %v572 = vpop.f32.mrf.mxu0
    %v573 = vadd.f32 0.0, %v572
    %v574 = vpop.f32.mrf.mxu0
    %v575 = vadd.f32 0.0, %v574
    %576 = vmatmul.bf16.gmra.mxu0 %v488
    %v577 = vpop.f32.mrf.mxu0
    %v578 = vadd.f32 0.0, %v577
    %v579 = vpop.f32.mrf.mxu0
    %v580 = vadd.f32 0.0, %v579
    %581 = vmatmul.bf16.gmra.mxu0 %v489
    %v582 = vpop.f32.mrf.mxu0
    %v583 = vadd.f32 0.0, %v582
    %v584 = vpop.f32.mrf.mxu0
    %v585 = vadd.f32 0.0, %v584
    %586 = vmatmul.bf16.gmra.mxu0 %v490
    %v587 = vpop.f32.mrf.mxu0
    %v588 = vadd.f32 0.0, %v587
    %v589 = vpop.f32.mrf.mxu0
    %v590 = vadd.f32 0.0, %v589
    %591 = vmatmul.bf16.gmra.mxu0 %v491
    %v592 = vpop.f32.mrf.mxu0
    %v593 = vadd.f32 0.0, %v592
    %v594 = vpop.f32.mrf.mxu0
    %v595 = vadd.f32 0.0, %v594
    %596 = vmatmul.bf16.gmra.mxu0 %v492
    %v597 = vpop.f32.mrf.mxu0
    %v598 = vadd.f32 0.0, %v597
    %v599 = vpop.f32.mrf.mxu0
    %v600 = vadd.f32 0.0, %v599
    %601 = vmatmul.bf16.gmra.mxu0 %v493
    %v602 = vpop.f32.mrf.mxu0
    %v603 = vadd.f32 0.0, %v602
    %v604 = vpop.f32.mrf.mxu0
    %v605 = vadd.f32 0.0, %v604
    %606 = vdwg.mxu0
    %v607 = vmul.f32 %v238, %v568
    %v608 = vmul.f32 %v243, %v570
    %v609 = vmul.f32 %v248, %v573
    %v610 = vmul.f32 %v253, %v575
    %v611 = vmul.f32 %v258, %v578
    %v612 = vmul.f32 %v263, %v580
    %v613 = vmul.f32 %v268, %v583
    %v614 = vmul.f32 %v273, %v585
    %v615 = vmul.f32 %v278, %v588
    %v616 = vmul.f32 %v283, %v590
    %v617 = vmul.f32 %v288, %v593
    %v618 = vmul.f32 %v293, %v595
    %v619 = vmul.f32 %v298, %v598
    %v620 = vmul.f32 %v303, %v600
    %v621 = vmul.f32 %v308, %v603
    %v622 = vmul.f32 %v313, %v605
    %v623 = vpack.c.bf16 %v608, %v607
    %v624 = vpack.c.bf16 %v610, %v609
    %v625 = vpack.c.bf16 %v612, %v611
    %v626 = vpack.c.bf16 %v614, %v613
    %v627 = vpack.c.bf16 %v616, %v615
    %v628 = vpack.c.bf16 %v618, %v617
    %v629 = vpack.c.bf16 %v620, %v619
    %v630 = vpack.c.bf16 %v622, %v621
    %631 = vmatpush.bf16.msra.mxu0 %v630
    %632 = vmatpush.bf16.msra.mxu0 %v629
    %633 = vmatpush.bf16.msra.mxu0 %v628
    %634 = vmatpush.bf16.msra.mxu0 %v627
    %635 = vmatpush.bf16.msra.mxu0 %v626
    %636 = vmatpush.bf16.msra.mxu0 %v625
    %637 = vmatpush.bf16.msra.mxu0 %v624
    %638 = vmatpush.bf16.msra.mxu0 %v623
    %639 = vmatmul.bf16.gmra.mxu0 %v371
    %v640 = vpop.f32.mrf.mxu0
    %v641 = vadd.f32 0.0, %v640
    %v642 = vpop.f32.mrf.mxu0
    %v643 = vadd.f32 0.0, %v642
    %644 = vmatmul.bf16.gmra.mxu0 %v372
    %v645 = vpop.f32.mrf.mxu0
    %v646 = vadd.f32 0.0, %v645
    %v647 = vpop.f32.mrf.mxu0
    %v648 = vadd.f32 0.0, %v647
    %649 = vmatmul.bf16.gmra.mxu0 %v373
    %v650 = vpop.f32.mrf.mxu0
    %v651 = vadd.f32 0.0, %v650
    %v652 = vpop.f32.mrf.mxu0
    %v653 = vadd.f32 0.0, %v652
    %654 = vmatmul.bf16.gmra.mxu0 %v374
    %v655 = vpop.f32.mrf.mxu0
    %v656 = vadd.f32 0.0, %v655
    %v657 = vpop.f32.mrf.mxu0
    %v658 = vadd.f32 0.0, %v657
    %659 = vmatmul.bf16.gmra.mxu0 %v375
    %v660 = vpop.f32.mrf.mxu0
    %v661 = vadd.f32 0.0, %v660
    %v662 = vpop.f32.mrf.mxu0
    %v663 = vadd.f32 0.0, %v662
    %664 = vmatmul.bf16.gmra.mxu0 %v376
    %v665 = vpop.f32.mrf.mxu0
    %v666 = vadd.f32 0.0, %v665
    %v667 = vpop.f32.mrf.mxu0
    %v668 = vadd.f32 0.0, %v667
    %669 = vmatmul.bf16.gmra.mxu0 %v377
    %v670 = vpop.f32.mrf.mxu0
    %v671 = vadd.f32 0.0, %v670
    %v672 = vpop.f32.mrf.mxu0
    %v673 = vadd.f32 0.0, %v672
    %674 = vmatmul.bf16.gmra.mxu0 %v378
    %v675 = vpop.f32.mrf.mxu0
    %v676 = vadd.f32 0.0, %v675
    %v677 = vpop.f32.mrf.mxu0
    %v678 = vadd.f32 0.0, %v677
    %679 = vdwg.mxu0
    %v680 = vmul.f32 %v238, %v641
    %v681 = vmul.f32 %v243, %v643
    %v682 = vmul.f32 %v248, %v646
    %v683 = vmul.f32 %v253, %v648
    %v684 = vmul.f32 %v258, %v651
    %v685 = vmul.f32 %v263, %v653
    %v686 = vmul.f32 %v268, %v656
    %v687 = vmul.f32 %v273, %v658
    %v688 = vmul.f32 %v278, %v661
    %v689 = vmul.f32 %v283, %v663
    %v690 = vmul.f32 %v288, %v666
    %v691 = vmul.f32 %v293, %v668
    %v692 = vmul.f32 %v298, %v671
    %v693 = vmul.f32 %v303, %v673
    %v694 = vmul.f32 %v308, %v676
    %v695 = vmul.f32 %v313, %v678
    %v696 = vld [vmem:[#allocation7 + $0x1] sm:$0x1]
    %v697 = vperm.slane %v696, 0
    %v698 = vadd.f32 %v680, %v697
    %v699 = vadd.f32 %v681, %v697
    %v700 = vadd.f32 %v682, %v697
    %v701 = vadd.f32 %v683, %v697
    %v702 = vadd.f32 %v684, %v697
    %v703 = vadd.f32 %v685, %v697
    %v704 = vadd.f32 %v686, %v697
    %v705 = vadd.f32 %v687, %v697
    %v706 = vadd.f32 %v688, %v697
    %v707 = vadd.f32 %v689, %v697
    %v708 = vadd.f32 %v690, %v697
    %v709 = vadd.f32 %v691, %v697
    %v710 = vadd.f32 %v692, %v697
    %v711 = vadd.f32 %v693, %v697
    %v712 = vadd.f32 %v694, %v697
    %v713 = vadd.f32 %v695, %v697
    %v714 = vmax.f32 %v698, 0.0
    %v715 = vmax.f32 %v699, 0.0
    %v716 = vmax.f32 %v700, 0.0
    %v717 = vmax.f32 %v701, 0.0
    %v718 = vmax.f32 %v702, 0.0
    %v719 = vmax.f32 %v703, 0.0
    %v720 = vmax.f32 %v704, 0.0
    %v721 = vmax.f32 %v705, 0.0
    %v722 = vmax.f32 %v706, 0.0
    %v723 = vmax.f32 %v707, 0.0
    %v724 = vmax.f32 %v708, 0.0
    %v725 = vmax.f32 %v709, 0.0
    %v726 = vmax.f32 %v710, 0.0
    %v727 = vmax.f32 %v711, 0.0
    %v728 = vmax.f32 %v712, 0.0
    %v729 = vmax.f32 %v713, 0.0
    %v730 = vpack.c.bf16 %v715, %v714
    %v731 = vpack.c.bf16 %v717, %v716
    %v732 = vpack.c.bf16 %v719, %v718
    %v733 = vpack.c.bf16 %v721, %v720
    %v734 = vpack.c.bf16 %v723, %v722
    %v735 = vpack.c.bf16 %v725, %v724
    %v736 = vpack.c.bf16 %v727, %v726
    %v737 = vpack.c.bf16 %v729, %v728
    %v738 = vld [vmem:[#allocation5 + $0x8] sm:$0xf]
    %v739 = vld [vmem:[#allocation5 + $0x20] sm:$0xf]
    %v740 = vld [vmem:[#allocation5 + $0x38] sm:$0xf]
    %v741 = vld [vmem:[#allocation5 + $0x50] sm:$0xf]
    %v742 = vld [vmem:[#allocation5 + $0x68] sm:$0xf]
    %v743 = vld [vmem:[#allocation5 + $0x80] sm:$0xf]
    %v744 = vld [vmem:[#allocation5 + $0x98] sm:$0xf]
    %v745 = vld [vmem:[#allocation5 + $0xb0] sm:$0xf]
    %v746 = vld [vmem:[#allocation5 + $0xc8] sm:$0xf]
    %v747 = vld [vmem:[#allocation5 + $0xe0] sm:$0xf]
    %v748 = vld [vmem:[#allocation5 + $0xf8] sm:$0xf]
    %v749 = vld [vmem:[#allocation5 + $0x110] sm:$0xf]
    %v750 = vld [vmem:[#allocation5 + $0x128] sm:$0xf]
    %v751 = vld [vmem:[#allocation5 + $0x140] sm:$0xf]
    %v752 = vld [vmem:[#allocation5 + $0x158] sm:$0xf]
    %v753 = vld [vmem:[#allocation5 + $0x170] sm:$0xf]
    %v770 = vunpack.c.l.b16 %v738
    %v771 = vunpack.c.l.b16 %v739
    %v772 = vunpack.c.l.b16 %v740
    %v773 = vunpack.c.l.b16 %v741
    %v774 = vunpack.c.l.b16 %v742
    %v775 = vunpack.c.l.b16 %v743
    %v776 = vunpack.c.l.b16 %v744
    %v777 = vunpack.c.l.b16 %v745
    %v778 = vunpack.c.l.b16 %v746
    %v779 = vunpack.c.l.b16 %v747
    %v780 = vunpack.c.l.b16 %v748
    %v781 = vunpack.c.l.b16 %v749
    %v782 = vunpack.c.l.b16 %v750
    %v783 = vunpack.c.l.b16 %v751
    %v784 = vunpack.c.l.b16 %v752
    %v785 = vunpack.c.l.b16 %v753
    %v786 = vpack.c.b16 %v771, %v770
    %v787 = vpack.c.b16 %v773, %v772
    %v788 = vpack.c.b16 %v775, %v774
    %v789 = vpack.c.b16 %v777, %v776
    %v790 = vpack.c.b16 %v779, %v778
    %v791 = vpack.c.b16 %v781, %v780
    %v792 = vpack.c.b16 %v783, %v782
    %v793 = vpack.c.b16 %v785, %v784
    %802 = vmatpush.bf16.msra.mxu0 %v793
    %803 = vmatpush.bf16.msra.mxu0 %v792
    %804 = vmatpush.bf16.msra.mxu0 %v791
    %805 = vmatpush.bf16.msra.mxu0 %v790
    %806 = vmatpush.bf16.msra.mxu0 %v789
    %807 = vmatpush.bf16.msra.mxu0 %v788
    %808 = vmatpush.bf16.msra.mxu0 %v787
    %809 = vmatpush.bf16.msra.mxu0 %v786
    %810 = vmatmul.bf16.gmra.mxu0 %v730
    %v811 = vpop.f32.mrf.mxu0
    %v812 = vadd.f32 0.0, %v811
    %v813 = vpop.f32.mrf.mxu0
    %v814 = vadd.f32 0.0, %v813
    %815 = vmatmul.bf16.gmra.mxu0 %v731
    %v816 = vpop.f32.mrf.mxu0
    %v817 = vadd.f32 0.0, %v816
    %v818 = vpop.f32.mrf.mxu0
    %v819 = vadd.f32 0.0, %v818
    %820 = vmatmul.bf16.gmra.mxu0 %v732
    %v821 = vpop.f32.mrf.mxu0
    %v822 = vadd.f32 0.0, %v821
    %v823 = vpop.f32.mrf.mxu0
    %v824 = vadd.f32 0.0, %v823
    %825 = vmatmul.bf16.gmra.mxu0 %v733
    %v826 = vpop.f32.mrf.mxu0
    %v827 = vadd.f32 0.0, %v826
    %v828 = vpop.f32.mrf.mxu0
    %v829 = vadd.f32 0.0, %v828
    %830 = vmatmul.bf16.gmra.mxu0 %v734
    %v831 = vpop.f32.mrf.mxu0
    %v832 = vadd.f32 0.0, %v831
    %v833 = vpop.f32.mrf.mxu0
    %v834 = vadd.f32 0.0, %v833
    %835 = vmatmul.bf16.gmra.mxu0 %v735
    %v836 = vpop.f32.mrf.mxu0
    %v837 = vadd.f32 0.0, %v836
    %v838 = vpop.f32.mrf.mxu0
    %v839 = vadd.f32 0.0, %v838
    %840 = vmatmul.bf16.gmra.mxu0 %v736
    %v841 = vpop.f32.mrf.mxu0
    %v842 = vadd.f32 0.0, %v841
    %v843 = vpop.f32.mrf.mxu0
    %v844 = vadd.f32 0.0, %v843
    %845 = vmatmul.bf16.gmra.mxu0 %v737
    %v846 = vpop.f32.mrf.mxu0
    %v847 = vadd.f32 0.0, %v846
    %v848 = vpop.f32.mrf.mxu0
    %v849 = vadd.f32 0.0, %v848
    %850 = vdwg.mxu0
    %v851 = vld [vmem:[#allocation7 + $0x6] sm:$0x1]
    %v852 = vld [vmem:[#allocation7 + $0x7] sm:$0x1]
    %853 = vmatpush.xpose.msra.mxu0 %v849
    %854 = vmatpush.xpose.msra.mxu0 %v847
    %855 = vmatpush.xpose.msra.mxu0 %v844
    %856 = vmatpush.xpose.msra.mxu0 %v842
    %857 = vmatpush.xpose.msra.mxu0 %v839
    %858 = vmatpush.xpose.msra.mxu0 %v837
    %859 = vmatpush.xpose.msra.mxu0 %v834
    %860 = vmatpush.xpose.msra.mxu0 %v832
    %861 = vmatpush.xpose.msra.mxu0 %v829
    %862 = vmatpush.xpose.msra.mxu0 %v827
    %863 = vmatpush.xpose.msra.mxu0 %v824
    %864 = vmatpush.xpose.msra.mxu0 %v822
    %865 = vmatpush.xpose.msra.mxu0 %v819
    %866 = vmatpush.xpose.msra.mxu0 %v817
    %867 = vmatpush.xpose.msra.mxu0 %v814
    %868 = vmatpush.xpose.msra.mxu0 %v812
    %869 = vmatmul.f32.gmra.mxu0 %v851
    %v870 = vpop.f32.mrf.mxu0
    %v871 = vadd.f32 0.0, %v870
    %872 = vdwg.mxu0
    %v873 = vperm.slane %v852, 0
    %v874 = vmul.f32 %v812, %v873
    %v875 = vmul.f32 %v814, %v873
    %v876 = vmul.f32 %v817, %v873
    %v877 = vmul.f32 %v819, %v873
    %v878 = vmul.f32 %v822, %v873
    %v879 = vmul.f32 %v824, %v873
    %v880 = vmul.f32 %v827, %v873
    %v881 = vmul.f32 %v829, %v873
    %v882 = vmul.f32 %v832, %v873
    %v883 = vmul.f32 %v834, %v873
    %v884 = vmul.f32 %v837, %v873
    %v885 = vmul.f32 %v839, %v873
    %v886 = vmul.f32 %v842, %v873
    %v887 = vmul.f32 %v844, %v873
    %v888 = vmul.f32 %v847, %v873
    %v889 = vmul.f32 %v849, %v873
    %890 = vadd.xlane.f32.xlu0 %v874
    %v891 = vpop.xlane.xlu0 %890
    %892 = vadd.xlane.f32.xlu0 %v875
    %v893 = vpop.xlane.xlu0 %892
    %894 = vadd.xlane.f32.xlu0 %v876
    %v895 = vpop.xlane.xlu0 %894
    %896 = vadd.xlane.f32.xlu0 %v877
    %v897 = vpop.xlane.xlu0 %896
    %898 = vadd.xlane.f32.xlu0 %v878
    %v899 = vpop.xlane.xlu0 %898
    %900 = vadd.xlane.f32.xlu0 %v879
    %v901 = vpop.xlane.xlu0 %900
    %902 = vadd.xlane.f32.xlu0 %v880
    %v903 = vpop.xlane.xlu0 %902
    %904 = vadd.xlane.f32.xlu0 %v881
    %v905 = vpop.xlane.xlu0 %904
    %906 = vadd.xlane.f32.xlu0 %v882
    %v907 = vpop.xlane.xlu0 %906
    %908 = vadd.xlane.f32.xlu0 %v883
    %v909 = vpop.xlane.xlu0 %908
    %910 = vadd.xlane.f32.xlu0 %v884
    %v911 = vpop.xlane.xlu0 %910
    %912 = vadd.xlane.f32.xlu0 %v885
    %v913 = vpop.xlane.xlu0 %912
    %914 = vadd.xlane.f32.xlu0 %v886
    %v915 = vpop.xlane.xlu0 %914
    %916 = vadd.xlane.f32.xlu0 %v887
    %v917 = vpop.xlane.xlu0 %916
    %918 = vadd.xlane.f32.xlu0 %v888
    %v919 = vpop.xlane.xlu0 %918
    %920 = vadd.xlane.f32.xlu0 %v889
    %v921 = vpop.xlane.xlu0 %920
    %v922 = vperm.slane %v871, 0
    %v923 = vadd.f32 %v891, %v922
    %v924 = vadd.f32 %v893, %v922
    %v925 = vadd.f32 %v895, %v922
    %v926 = vadd.f32 %v897, %v922
    %v927 = vadd.f32 %v899, %v922
    %v928 = vadd.f32 %v901, %v922
    %v929 = vadd.f32 %v903, %v922
    %v930 = vadd.f32 %v905, %v922
    %v931 = vadd.f32 %v907, %v922
    %v932 = vadd.f32 %v909, %v922
    %v933 = vadd.f32 %v911, %v922
    %v934 = vadd.f32 %v913, %v922
    %v935 = vadd.f32 %v915, %v922
    %v936 = vadd.f32 %v917, %v922
    %v937 = vadd.f32 %v919, %v922
    %v938 = vadd.f32 %v921, %v922
    %vm939 = vcmp.gt.f32.partialorder %v923, 0.0
    %vm940 = vcmp.gt.f32.partialorder %v924, 0.0
    %vm941 = vcmp.gt.f32.partialorder %v925, 0.0
    %vm942 = vcmp.gt.f32.partialorder %v926, 0.0
    %vm943 = vcmp.gt.f32.partialorder %v927, 0.0
    %vm944 = vcmp.gt.f32.partialorder %v928, 0.0
    %vm945 = vcmp.gt.f32.partialorder %v929, 0.0
    %vm946 = vcmp.gt.f32.partialorder %v930, 0.0
    %vm947 = vcmp.gt.f32.partialorder %v931, 0.0
    %vm948 = vcmp.gt.f32.partialorder %v932, 0.0
    %vm949 = vcmp.gt.f32.partialorder %v933, 0.0
    %vm950 = vcmp.gt.f32.partialorder %v934, 0.0
    %vm951 = vcmp.gt.f32.partialorder %v935, 0.0
    %vm952 = vcmp.gt.f32.partialorder %v936, 0.0
    %vm953 = vcmp.gt.f32.partialorder %v937, 0.0
    %vm954 = vcmp.gt.f32.partialorder %v938, 0.0
    %v955 = vmul.f32 %v923, 0.2
    %v956 = vmul.f32 %v924, 0.2
    %v957 = vmul.f32 %v925, 0.2
    %v958 = vmul.f32 %v926, 0.2
    %v959 = vmul.f32 %v927, 0.2
    %v960 = vmul.f32 %v928, 0.2
    %v961 = vmul.f32 %v929, 0.2
    %v962 = vmul.f32 %v930, 0.2
    %v963 = vmul.f32 %v931, 0.2
    %v964 = vmul.f32 %v932, 0.2
    %v965 = vmul.f32 %v933, 0.2
    %v966 = vmul.f32 %v934, 0.2
    %v967 = vmul.f32 %v935, 0.2
    %v968 = vmul.f32 %v936, 0.2
    %v969 = vmul.f32 %v937, 0.2
    %v970 = vmul.f32 %v938, 0.2
    %v971 = vsel %vm939, %v923, %v955
    %v972 = vsel %vm940, %v924, %v956
    %v973 = vsel %vm941, %v925, %v957
    %v974 = vsel %vm942, %v926, %v958
    %v975 = vsel %vm943, %v927, %v959
    %v976 = vsel %vm944, %v928, %v960
    %v977 = vsel %vm945, %v929, %v961
    %v978 = vsel %vm946, %v930, %v962
    %v979 = vsel %vm947, %v931, %v963
    %v980 = vsel %vm948, %v932, %v964
    %v981 = vsel %vm949, %v933, %v965
    %v982 = vsel %vm950, %v934, %v966
    %v983 = vsel %vm951, %v935, %v967
    %v984 = vsel %vm952, %v936, %v968
    %v985 = vsel %vm953, %v937, %v969
    %v986 = vsel %vm954, %v938, %v970
    %v987 = vunpack.c.l.bf16 %v66
    %v988 = vunpack.c.l.bf16 %v67
    %v989 = vunpack.c.l.bf16 %v68
    %v990 = vunpack.c.l.bf16 %v69
    %v991 = vunpack.c.l.bf16 %v70
    %v992 = vunpack.c.l.bf16 %v71
    %v993 = vunpack.c.l.bf16 %v72
    %v994 = vunpack.c.l.bf16 %v73
    %v995 = vunpack.c.l.bf16 %v74
    %v996 = vunpack.c.l.bf16 %v75
    %v997 = vunpack.c.l.bf16 %v76
    %v998 = vunpack.c.l.bf16 %v77
    %v999 = vunpack.c.l.bf16 %v78
    %v1000 = vunpack.c.l.bf16 %v79
    %v1001 = vunpack.c.l.bf16 %v80
    %v1002 = vunpack.c.l.bf16 %v81
    %vm1003 = vcmp.gt.f32.partialorder %v987, 0.0
    %vm1004 = vcmp.gt.f32.partialorder %v988, 0.0
    %vm1005 = vcmp.gt.f32.partialorder %v989, 0.0
    %vm1006 = vcmp.gt.f32.partialorder %v990, 0.0
    %vm1007 = vcmp.gt.f32.partialorder %v991, 0.0
    %vm1008 = vcmp.gt.f32.partialorder %v992, 0.0
    %vm1009 = vcmp.gt.f32.partialorder %v993, 0.0
    %vm1010 = vcmp.gt.f32.partialorder %v994, 0.0
    %vm1011 = vcmp.gt.f32.partialorder %v995, 0.0
    %vm1012 = vcmp.gt.f32.partialorder %v996, 0.0
    %vm1013 = vcmp.gt.f32.partialorder %v997, 0.0
    %vm1014 = vcmp.gt.f32.partialorder %v998, 0.0
    %vm1015 = vcmp.gt.f32.partialorder %v999, 0.0
    %vm1016 = vcmp.gt.f32.partialorder %v1000, 0.0
    %vm1017 = vcmp.gt.f32.partialorder %v1001, 0.0
    %vm1018 = vcmp.gt.f32.partialorder %v1002, 0.0
    %v1019 = vsel %vm1003, %v971, -1e+30
    %v1020 = vsel %vm1004, %v972, -1e+30
    %v1021 = vsel %vm1005, %v973, -1e+30
    %v1022 = vsel %vm1006, %v974, -1e+30
    %v1023 = vsel %vm1007, %v975, -1e+30
    %v1024 = vsel %vm1008, %v976, -1e+30
    %v1025 = vsel %vm1009, %v977, -1e+30
    %v1026 = vsel %vm1010, %v978, -1e+30
    %v1027 = vsel %vm1011, %v979, -1e+30
    %v1028 = vsel %vm1012, %v980, -1e+30
    %v1029 = vsel %vm1013, %v981, -1e+30
    %v1030 = vsel %vm1014, %v982, -1e+30
    %v1031 = vsel %vm1015, %v983, -1e+30
    %v1032 = vsel %vm1016, %v984, -1e+30
    %v1033 = vsel %vm1017, %v985, -1e+30
    %v1034 = vsel %vm1018, %v986, -1e+30
    %1035 = vmax.xlane.f32.xlu0 %v1019
    %v1036 = vpop.xlane.xlu0 %1035
    %1037 = vmax.xlane.f32.xlu0 %v1020
    %v1038 = vpop.xlane.xlu0 %1037
    %1039 = vmax.xlane.f32.xlu0 %v1021
    %v1040 = vpop.xlane.xlu0 %1039
    %1041 = vmax.xlane.f32.xlu0 %v1022
    %v1042 = vpop.xlane.xlu0 %1041
    %1043 = vmax.xlane.f32.xlu0 %v1023
    %v1044 = vpop.xlane.xlu0 %1043
    %1045 = vmax.xlane.f32.xlu0 %v1024
    %v1046 = vpop.xlane.xlu0 %1045
    %1047 = vmax.xlane.f32.xlu0 %v1025
    %v1048 = vpop.xlane.xlu0 %1047
    %1049 = vmax.xlane.f32.xlu0 %v1026
    %v1050 = vpop.xlane.xlu0 %1049
    %1051 = vmax.xlane.f32.xlu0 %v1027
    %v1052 = vpop.xlane.xlu0 %1051
    %1053 = vmax.xlane.f32.xlu0 %v1028
    %v1054 = vpop.xlane.xlu0 %1053
    %1055 = vmax.xlane.f32.xlu0 %v1029
    %v1056 = vpop.xlane.xlu0 %1055
    %1057 = vmax.xlane.f32.xlu0 %v1030
    %v1058 = vpop.xlane.xlu0 %1057
    %1059 = vmax.xlane.f32.xlu0 %v1031
    %v1060 = vpop.xlane.xlu0 %1059
    %1061 = vmax.xlane.f32.xlu0 %v1032
    %v1062 = vpop.xlane.xlu0 %1061
    %1063 = vmax.xlane.f32.xlu0 %v1033
    %v1064 = vpop.xlane.xlu0 %1063
    %1065 = vmax.xlane.f32.xlu0 %v1034
    %v1066 = vpop.xlane.xlu0 %1065
    %v1067 = vsub.f32 %v1019, %v1036
    %v1068 = vsub.f32 %v1020, %v1038
    %v1069 = vsub.f32 %v1021, %v1040
    %v1070 = vsub.f32 %v1022, %v1042
    %v1071 = vsub.f32 %v1023, %v1044
    %v1072 = vsub.f32 %v1024, %v1046
    %v1073 = vsub.f32 %v1025, %v1048
    %v1074 = vsub.f32 %v1026, %v1050
    %v1075 = vsub.f32 %v1027, %v1052
    %v1076 = vsub.f32 %v1028, %v1054
    %v1077 = vsub.f32 %v1029, %v1056
    %v1078 = vsub.f32 %v1030, %v1058
    %v1079 = vsub.f32 %v1031, %v1060
    %v1080 = vsub.f32 %v1032, %v1062
    %v1081 = vsub.f32 %v1033, %v1064
    %v1082 = vsub.f32 %v1034, %v1066
    %v1083 = vmul.f32 %v1067, 1.442695
    %v1084 = vpow.pop %v1083
    %v1085 = vmul.f32 %v1068, 1.442695
    %v1086 = vpow.pop %v1085
    %v1087 = vmul.f32 %v1069, 1.442695
    %v1088 = vpow.pop %v1087
    %v1089 = vmul.f32 %v1070, 1.442695
    %v1090 = vpow.pop %v1089
    %v1091 = vmul.f32 %v1071, 1.442695
    %v1092 = vpow.pop %v1091
    %v1093 = vmul.f32 %v1072, 1.442695
    %v1094 = vpow.pop %v1093
    %v1095 = vmul.f32 %v1073, 1.442695
    %v1096 = vpow.pop %v1095
    %v1097 = vmul.f32 %v1074, 1.442695
    %v1098 = vpow.pop %v1097
    %v1099 = vmul.f32 %v1075, 1.442695
    %v1100 = vpow.pop %v1099
    %v1101 = vmul.f32 %v1076, 1.442695
    %v1102 = vpow.pop %v1101
    %v1103 = vmul.f32 %v1077, 1.442695
    %v1104 = vpow.pop %v1103
    %v1105 = vmul.f32 %v1078, 1.442695
    %v1106 = vpow.pop %v1105
    %v1107 = vmul.f32 %v1079, 1.442695
    %v1108 = vpow.pop %v1107
    %v1109 = vmul.f32 %v1080, 1.442695
    %v1110 = vpow.pop %v1109
    %v1111 = vmul.f32 %v1081, 1.442695
    %v1112 = vpow.pop %v1111
    %v1113 = vmul.f32 %v1082, 1.442695
    %v1114 = vpow.pop %v1113
    %v1115 = vpack.c.bf16 %v1086, %v1084
    %v1116 = vpack.c.bf16 %v1090, %v1088
    %v1117 = vpack.c.bf16 %v1094, %v1092
    %v1118 = vpack.c.bf16 %v1098, %v1096
    %v1119 = vpack.c.bf16 %v1102, %v1100
    %v1120 = vpack.c.bf16 %v1106, %v1104
    %v1121 = vpack.c.bf16 %v1110, %v1108
    %v1122 = vpack.c.bf16 %v1114, %v1112
    %v1123 = vpack.c.bf16 %v814, %v812
    %v1124 = vpack.c.bf16 %v819, %v817
    %v1125 = vpack.c.bf16 %v824, %v822
    %v1126 = vpack.c.bf16 %v829, %v827
    %v1127 = vpack.c.bf16 %v834, %v832
    %v1128 = vpack.c.bf16 %v839, %v837
    %v1129 = vpack.c.bf16 %v844, %v842
    %v1130 = vpack.c.bf16 %v849, %v847
    %1131 = vmatpush.bf16.msra.mxu0 %v1130
    %1132 = vmatpush.bf16.msra.mxu0 %v1129
    %1133 = vmatpush.bf16.msra.mxu0 %v1128
    %1134 = vmatpush.bf16.msra.mxu0 %v1127
    %1135 = vmatpush.bf16.msra.mxu0 %v1126
    %1136 = vmatpush.bf16.msra.mxu0 %v1125
    %1137 = vmatpush.bf16.msra.mxu0 %v1124
    %1138 = vmatpush.bf16.msra.mxu0 %v1123
    %1139 = vmatmul.bf16.gmra.mxu0 %v1115
    %v1140 = vpop.f32.mrf.mxu0
    %v1141 = vadd.f32 0.0, %v1140
    %v1142 = vpop.f32.mrf.mxu0
    %v1143 = vadd.f32 0.0, %v1142
    %1144 = vmatmul.bf16.gmra.mxu0 %v1116
    %v1145 = vpop.f32.mrf.mxu0
    %v1146 = vadd.f32 0.0, %v1145
    %v1147 = vpop.f32.mrf.mxu0
    %v1148 = vadd.f32 0.0, %v1147
    %1149 = vmatmul.bf16.gmra.mxu0 %v1117
    %v1150 = vpop.f32.mrf.mxu0
    %v1151 = vadd.f32 0.0, %v1150
    %v1152 = vpop.f32.mrf.mxu0
    %v1153 = vadd.f32 0.0, %v1152
    %1154 = vmatmul.bf16.gmra.mxu0 %v1118
    %v1155 = vpop.f32.mrf.mxu0
    %v1156 = vadd.f32 0.0, %v1155
    %v1157 = vpop.f32.mrf.mxu0
    %v1158 = vadd.f32 0.0, %v1157
    %1159 = vmatmul.bf16.gmra.mxu0 %v1119
    %v1160 = vpop.f32.mrf.mxu0
    %v1161 = vadd.f32 0.0, %v1160
    %v1162 = vpop.f32.mrf.mxu0
    %v1163 = vadd.f32 0.0, %v1162
    %1164 = vmatmul.bf16.gmra.mxu0 %v1120
    %v1165 = vpop.f32.mrf.mxu0
    %v1166 = vadd.f32 0.0, %v1165
    %v1167 = vpop.f32.mrf.mxu0
    %v1168 = vadd.f32 0.0, %v1167
    %1169 = vmatmul.bf16.gmra.mxu0 %v1121
    %v1170 = vpop.f32.mrf.mxu0
    %v1171 = vadd.f32 0.0, %v1170
    %v1172 = vpop.f32.mrf.mxu0
    %v1173 = vadd.f32 0.0, %v1172
    %1174 = vmatmul.bf16.gmra.mxu0 %v1122
    %v1175 = vpop.f32.mrf.mxu0
    %v1176 = vadd.f32 0.0, %v1175
    %v1177 = vpop.f32.mrf.mxu0
    %v1178 = vadd.f32 0.0, %v1177
    %1179 = vdwg.mxu0
    %1180 = vadd.xlane.f32.xlu0 %v1084
    %v1181 = vpop.xlane.xlu0 %1180
    %1182 = vadd.xlane.f32.xlu0 %v1086
    %v1183 = vpop.xlane.xlu0 %1182
    %1184 = vadd.xlane.f32.xlu0 %v1088
    %v1185 = vpop.xlane.xlu0 %1184
    %1186 = vadd.xlane.f32.xlu0 %v1090
    %v1187 = vpop.xlane.xlu0 %1186
    %1188 = vadd.xlane.f32.xlu0 %v1092
    %v1189 = vpop.xlane.xlu0 %1188
    %1190 = vadd.xlane.f32.xlu0 %v1094
    %v1191 = vpop.xlane.xlu0 %1190
    %1192 = vadd.xlane.f32.xlu0 %v1096
    %v1193 = vpop.xlane.xlu0 %1192
    %1194 = vadd.xlane.f32.xlu0 %v1098
    %v1195 = vpop.xlane.xlu0 %1194
    %1196 = vadd.xlane.f32.xlu0 %v1100
    %v1197 = vpop.xlane.xlu0 %1196
    %1198 = vadd.xlane.f32.xlu0 %v1102
    %v1199 = vpop.xlane.xlu0 %1198
    %1200 = vadd.xlane.f32.xlu0 %v1104
    %v1201 = vpop.xlane.xlu0 %1200
    %1202 = vadd.xlane.f32.xlu0 %v1106
    %v1203 = vpop.xlane.xlu0 %1202
    %1204 = vadd.xlane.f32.xlu0 %v1108
    %v1205 = vpop.xlane.xlu0 %1204
    %1206 = vadd.xlane.f32.xlu0 %v1110
    %v1207 = vpop.xlane.xlu0 %1206
    %1208 = vadd.xlane.f32.xlu0 %v1112
    %v1209 = vpop.xlane.xlu0 %1208
    %1210 = vadd.xlane.f32.xlu0 %v1114
    %v1211 = vpop.xlane.xlu0 %1210
    %v1212 = vrcp.pop %v1181
    %v1213 = vrcp.pop %v1183
    %v1214 = vrcp.pop %v1185
    %v1215 = vrcp.pop %v1187
    %v1216 = vrcp.pop %v1189
    %v1217 = vrcp.pop %v1191
    %v1218 = vrcp.pop %v1193
    %v1219 = vrcp.pop %v1195
    %v1220 = vrcp.pop %v1197
    %v1221 = vrcp.pop %v1199
    %v1222 = vrcp.pop %v1201
    %v1223 = vrcp.pop %v1203
    %v1224 = vrcp.pop %v1205
    %v1225 = vrcp.pop %v1207
    %v1226 = vrcp.pop %v1209
    %v1227 = vrcp.pop %v1211
    %v1228 = vmul.f32 %v1141, %v1212
    %v1229 = vmul.f32 %v1143, %v1213
    %v1230 = vmul.f32 %v1146, %v1214
    %v1231 = vmul.f32 %v1148, %v1215
    %v1232 = vmul.f32 %v1151, %v1216
    %v1233 = vmul.f32 %v1153, %v1217
    %v1234 = vmul.f32 %v1156, %v1218
    %v1235 = vmul.f32 %v1158, %v1219
    %v1236 = vmul.f32 %v1161, %v1220
    %v1237 = vmul.f32 %v1163, %v1221
    %v1238 = vmul.f32 %v1166, %v1222
    %v1239 = vmul.f32 %v1168, %v1223
    %v1240 = vmul.f32 %v1171, %v1224
    %v1241 = vmul.f32 %v1173, %v1225
    %v1242 = vmul.f32 %v1176, %v1226
    %v1243 = vmul.f32 %v1178, %v1227
    %v1244 = vld [vmem:[#allocation7 + $0x2] sm:$0x1]
    %v1245 = vperm.slane %v1244, 0
    %v1246 = vadd.f32 %v1228, %v1245
    %v1247 = vadd.f32 %v1229, %v1245
    %v1248 = vadd.f32 %v1230, %v1245
    %v1249 = vadd.f32 %v1231, %v1245
    %v1250 = vadd.f32 %v1232, %v1245
    %v1251 = vadd.f32 %v1233, %v1245
    %v1252 = vadd.f32 %v1234, %v1245
    %v1253 = vadd.f32 %v1235, %v1245
    %v1254 = vadd.f32 %v1236, %v1245
    %v1255 = vadd.f32 %v1237, %v1245
    %v1256 = vadd.f32 %v1238, %v1245
    %v1257 = vadd.f32 %v1239, %v1245
    %v1258 = vadd.f32 %v1240, %v1245
    %v1259 = vadd.f32 %v1241, %v1245
    %v1260 = vadd.f32 %v1242, %v1245
    %v1261 = vadd.f32 %v1243, %v1245
    %v1262 = vmax.f32 %v1246, 0.0
    %v1263 = vmax.f32 %v1247, 0.0
    %v1264 = vmax.f32 %v1248, 0.0
    %v1265 = vmax.f32 %v1249, 0.0
    %v1266 = vmax.f32 %v1250, 0.0
    %v1267 = vmax.f32 %v1251, 0.0
    %v1268 = vmax.f32 %v1252, 0.0
    %v1269 = vmax.f32 %v1253, 0.0
    %v1270 = vmax.f32 %v1254, 0.0
    %v1271 = vmax.f32 %v1255, 0.0
    %v1272 = vmax.f32 %v1256, 0.0
    %v1273 = vmax.f32 %v1257, 0.0
    %v1274 = vmax.f32 %v1258, 0.0
    %v1275 = vmax.f32 %v1259, 0.0
    %v1276 = vmax.f32 %v1260, 0.0
    %v1277 = vmax.f32 %v1261, 0.0
    %v1278 = vpack.c.bf16 %v1263, %v1262
    %v1279 = vpack.c.bf16 %v1265, %v1264
    %v1280 = vpack.c.bf16 %v1267, %v1266
    %v1281 = vpack.c.bf16 %v1269, %v1268
    %v1282 = vpack.c.bf16 %v1271, %v1270
    %v1283 = vpack.c.bf16 %v1273, %v1272
    %v1284 = vpack.c.bf16 %v1275, %v1274
    %v1285 = vpack.c.bf16 %v1277, %v1276
    %v1286 = vld [vmem:[#allocation5 + $0xc] sm:$0xf]
    %v1287 = vld [vmem:[#allocation5 + $0x24] sm:$0xf]
    %v1288 = vld [vmem:[#allocation5 + $0x3c] sm:$0xf]
    %v1289 = vld [vmem:[#allocation5 + $0x54] sm:$0xf]
    %v1290 = vld [vmem:[#allocation5 + $0x6c] sm:$0xf]
    %v1291 = vld [vmem:[#allocation5 + $0x84] sm:$0xf]
    %v1292 = vld [vmem:[#allocation5 + $0x9c] sm:$0xf]
    %v1293 = vld [vmem:[#allocation5 + $0xb4] sm:$0xf]
    %v1294 = vld [vmem:[#allocation5 + $0xcc] sm:$0xf]
    %v1295 = vld [vmem:[#allocation5 + $0xe4] sm:$0xf]
    %v1296 = vld [vmem:[#allocation5 + $0xfc] sm:$0xf]
    %v1297 = vld [vmem:[#allocation5 + $0x114] sm:$0xf]
    %v1298 = vld [vmem:[#allocation5 + $0x12c] sm:$0xf]
    %v1299 = vld [vmem:[#allocation5 + $0x144] sm:$0xf]
    %v1300 = vld [vmem:[#allocation5 + $0x15c] sm:$0xf]
    %v1301 = vld [vmem:[#allocation5 + $0x174] sm:$0xf]
    %v1318 = vunpack.c.l.b16 %v1286
    %v1319 = vunpack.c.l.b16 %v1287
    %v1320 = vunpack.c.l.b16 %v1288
    %v1321 = vunpack.c.l.b16 %v1289
    %v1322 = vunpack.c.l.b16 %v1290
    %v1323 = vunpack.c.l.b16 %v1291
    %v1324 = vunpack.c.l.b16 %v1292
    %v1325 = vunpack.c.l.b16 %v1293
    %v1326 = vunpack.c.l.b16 %v1294
    %v1327 = vunpack.c.l.b16 %v1295
    %v1328 = vunpack.c.l.b16 %v1296
    %v1329 = vunpack.c.l.b16 %v1297
    %v1330 = vunpack.c.l.b16 %v1298
    %v1331 = vunpack.c.l.b16 %v1299
    %v1332 = vunpack.c.l.b16 %v1300
    %v1333 = vunpack.c.l.b16 %v1301
    %v1334 = vpack.c.b16 %v1319, %v1318
    %v1335 = vpack.c.b16 %v1321, %v1320
    %v1336 = vpack.c.b16 %v1323, %v1322
    %v1337 = vpack.c.b16 %v1325, %v1324
    %v1338 = vpack.c.b16 %v1327, %v1326
    %v1339 = vpack.c.b16 %v1329, %v1328
    %v1340 = vpack.c.b16 %v1331, %v1330
    %v1341 = vpack.c.b16 %v1333, %v1332
    %1350 = vmatpush.bf16.msra.mxu0 %v1341
    %1351 = vmatpush.bf16.msra.mxu0 %v1340
    %1352 = vmatpush.bf16.msra.mxu0 %v1339
    %1353 = vmatpush.bf16.msra.mxu0 %v1338
    %1354 = vmatpush.bf16.msra.mxu0 %v1337
    %1355 = vmatpush.bf16.msra.mxu0 %v1336
    %1356 = vmatpush.bf16.msra.mxu0 %v1335
    %1357 = vmatpush.bf16.msra.mxu0 %v1334
    %1358 = vmatmul.bf16.gmra.mxu0 %v1278
    %v1359 = vpop.f32.mrf.mxu0
    %v1360 = vadd.f32 0.0, %v1359
    %v1361 = vpop.f32.mrf.mxu0
    %v1362 = vadd.f32 0.0, %v1361
    %1363 = vmatmul.bf16.gmra.mxu0 %v1279
    %v1364 = vpop.f32.mrf.mxu0
    %v1365 = vadd.f32 0.0, %v1364
    %v1366 = vpop.f32.mrf.mxu0
    %v1367 = vadd.f32 0.0, %v1366
    %1368 = vmatmul.bf16.gmra.mxu0 %v1280
    %v1369 = vpop.f32.mrf.mxu0
    %v1370 = vadd.f32 0.0, %v1369
    %v1371 = vpop.f32.mrf.mxu0
    %v1372 = vadd.f32 0.0, %v1371
    %1373 = vmatmul.bf16.gmra.mxu0 %v1281
    %v1374 = vpop.f32.mrf.mxu0
    %v1375 = vadd.f32 0.0, %v1374
    %v1376 = vpop.f32.mrf.mxu0
    %v1377 = vadd.f32 0.0, %v1376
    %1378 = vmatmul.bf16.gmra.mxu0 %v1282
    %v1379 = vpop.f32.mrf.mxu0
    %v1380 = vadd.f32 0.0, %v1379
    %v1381 = vpop.f32.mrf.mxu0
    %v1382 = vadd.f32 0.0, %v1381
    %1383 = vmatmul.bf16.gmra.mxu0 %v1283
    %v1384 = vpop.f32.mrf.mxu0
    %v1385 = vadd.f32 0.0, %v1384
    %v1386 = vpop.f32.mrf.mxu0
    %v1387 = vadd.f32 0.0, %v1386
    %1388 = vmatmul.bf16.gmra.mxu0 %v1284
    %v1389 = vpop.f32.mrf.mxu0
    %v1390 = vadd.f32 0.0, %v1389
    %v1391 = vpop.f32.mrf.mxu0
    %v1392 = vadd.f32 0.0, %v1391
    %1393 = vmatmul.bf16.gmra.mxu0 %v1285
    %v1394 = vpop.f32.mrf.mxu0
    %v1395 = vadd.f32 0.0, %v1394
    %v1396 = vpop.f32.mrf.mxu0
    %v1397 = vadd.f32 0.0, %v1396
    %1398 = vdwg.mxu0
    %v1399 = vmul.f32 %v238, %v1360
    %v1400 = vmul.f32 %v243, %v1362
    %v1401 = vmul.f32 %v248, %v1365
    %v1402 = vmul.f32 %v253, %v1367
    %v1403 = vmul.f32 %v258, %v1370
    %v1404 = vmul.f32 %v263, %v1372
    %v1405 = vmul.f32 %v268, %v1375
    %v1406 = vmul.f32 %v273, %v1377
    %v1407 = vmul.f32 %v278, %v1380
    %v1408 = vmul.f32 %v283, %v1382
    %v1409 = vmul.f32 %v288, %v1385
    %v1410 = vmul.f32 %v293, %v1387
    %v1411 = vmul.f32 %v298, %v1390
    %v1412 = vmul.f32 %v303, %v1392
    %v1413 = vmul.f32 %v308, %v1395
    %v1414 = vmul.f32 %v313, %v1397
    %v1415 = vpack.c.bf16 %v1400, %v1399
    %v1416 = vpack.c.bf16 %v1402, %v1401
    %v1417 = vpack.c.bf16 %v1404, %v1403
    %v1418 = vpack.c.bf16 %v1406, %v1405
    %v1419 = vpack.c.bf16 %v1408, %v1407
    %v1420 = vpack.c.bf16 %v1410, %v1409
    %v1421 = vpack.c.bf16 %v1412, %v1411
    %v1422 = vpack.c.bf16 %v1414, %v1413
    %1423 = vmatpush.bf16.msra.mxu0 %v1422
    %1424 = vmatpush.bf16.msra.mxu0 %v1421
    %1425 = vmatpush.bf16.msra.mxu0 %v1420
    %1426 = vmatpush.bf16.msra.mxu0 %v1419
    %1427 = vmatpush.bf16.msra.mxu0 %v1418
    %1428 = vmatpush.bf16.msra.mxu0 %v1417
    %1429 = vmatpush.bf16.msra.mxu0 %v1416
    %1430 = vmatpush.bf16.msra.mxu0 %v1415
    %1431 = vmatmul.bf16.gmra.mxu0 %v371
    %v1432 = vpop.f32.mrf.mxu0
    %v1433 = vadd.f32 0.0, %v1432
    %v1434 = vpop.f32.mrf.mxu0
    %v1435 = vadd.f32 0.0, %v1434
    %1436 = vmatmul.bf16.gmra.mxu0 %v372
    %v1437 = vpop.f32.mrf.mxu0
    %v1438 = vadd.f32 0.0, %v1437
    %v1439 = vpop.f32.mrf.mxu0
    %v1440 = vadd.f32 0.0, %v1439
    %1441 = vmatmul.bf16.gmra.mxu0 %v373
    %v1442 = vpop.f32.mrf.mxu0
    %v1443 = vadd.f32 0.0, %v1442
    %v1444 = vpop.f32.mrf.mxu0
    %v1445 = vadd.f32 0.0, %v1444
    %1446 = vmatmul.bf16.gmra.mxu0 %v374
    %v1447 = vpop.f32.mrf.mxu0
    %v1448 = vadd.f32 0.0, %v1447
    %v1449 = vpop.f32.mrf.mxu0
    %v1450 = vadd.f32 0.0, %v1449
    %1451 = vmatmul.bf16.gmra.mxu0 %v375
    %v1452 = vpop.f32.mrf.mxu0
    %v1453 = vadd.f32 0.0, %v1452
    %v1454 = vpop.f32.mrf.mxu0
    %v1455 = vadd.f32 0.0, %v1454
    %1456 = vmatmul.bf16.gmra.mxu0 %v376
    %v1457 = vpop.f32.mrf.mxu0
    %v1458 = vadd.f32 0.0, %v1457
    %v1459 = vpop.f32.mrf.mxu0
    %v1460 = vadd.f32 0.0, %v1459
    %1461 = vmatmul.bf16.gmra.mxu0 %v377
    %v1462 = vpop.f32.mrf.mxu0
    %v1463 = vadd.f32 0.0, %v1462
    %v1464 = vpop.f32.mrf.mxu0
    %v1465 = vadd.f32 0.0, %v1464
    %1466 = vmatmul.bf16.gmra.mxu0 %v378
    %v1467 = vpop.f32.mrf.mxu0
    %v1468 = vadd.f32 0.0, %v1467
    %v1469 = vpop.f32.mrf.mxu0
    %v1470 = vadd.f32 0.0, %v1469
    %1471 = vdwg.mxu0
    %v1472 = vmul.f32 %v238, %v1433
    %v1473 = vmul.f32 %v243, %v1435
    %v1474 = vmul.f32 %v248, %v1438
    %v1475 = vmul.f32 %v253, %v1440
    %v1476 = vmul.f32 %v258, %v1443
    %v1477 = vmul.f32 %v263, %v1445
    %v1478 = vmul.f32 %v268, %v1448
    %v1479 = vmul.f32 %v273, %v1450
    %v1480 = vmul.f32 %v278, %v1453
    %v1481 = vmul.f32 %v283, %v1455
    %v1482 = vmul.f32 %v288, %v1458
    %v1483 = vmul.f32 %v293, %v1460
    %v1484 = vmul.f32 %v298, %v1463
    %v1485 = vmul.f32 %v303, %v1465
    %v1486 = vmul.f32 %v308, %v1468
    %v1487 = vmul.f32 %v313, %v1470
    %v1488 = vld [vmem:[#allocation7 + $0x3] sm:$0x1]
    %v1489 = vperm.slane %v1488, 0
    %v1490 = vadd.f32 %v1472, %v1489
    %v1491 = vadd.f32 %v1473, %v1489
    %v1492 = vadd.f32 %v1474, %v1489
    %v1493 = vadd.f32 %v1475, %v1489
    %v1494 = vadd.f32 %v1476, %v1489
    %v1495 = vadd.f32 %v1477, %v1489
    %v1496 = vadd.f32 %v1478, %v1489
    %v1497 = vadd.f32 %v1479, %v1489
    %v1498 = vadd.f32 %v1480, %v1489
    %v1499 = vadd.f32 %v1481, %v1489
    %v1500 = vadd.f32 %v1482, %v1489
    %v1501 = vadd.f32 %v1483, %v1489
    %v1502 = vadd.f32 %v1484, %v1489
    %v1503 = vadd.f32 %v1485, %v1489
    %v1504 = vadd.f32 %v1486, %v1489
    %v1505 = vadd.f32 %v1487, %v1489
    %v1506 = vmax.f32 %v1490, 0.0
    %v1507 = vmax.f32 %v1491, 0.0
    %v1508 = vmax.f32 %v1492, 0.0
    %v1509 = vmax.f32 %v1493, 0.0
    %v1510 = vmax.f32 %v1494, 0.0
    %v1511 = vmax.f32 %v1495, 0.0
    %v1512 = vmax.f32 %v1496, 0.0
    %v1513 = vmax.f32 %v1497, 0.0
    %v1514 = vmax.f32 %v1498, 0.0
    %v1515 = vmax.f32 %v1499, 0.0
    %v1516 = vmax.f32 %v1500, 0.0
    %v1517 = vmax.f32 %v1501, 0.0
    %v1518 = vmax.f32 %v1502, 0.0
    %v1519 = vmax.f32 %v1503, 0.0
    %v1520 = vmax.f32 %v1504, 0.0
    %v1521 = vmax.f32 %v1505, 0.0
    %v1522 = vpack.c.bf16 %v1507, %v1506
    %v1523 = vpack.c.bf16 %v1509, %v1508
    %v1524 = vpack.c.bf16 %v1511, %v1510
    %v1525 = vpack.c.bf16 %v1513, %v1512
    %v1526 = vpack.c.bf16 %v1515, %v1514
    %v1527 = vpack.c.bf16 %v1517, %v1516
    %v1528 = vpack.c.bf16 %v1519, %v1518
    %v1529 = vpack.c.bf16 %v1521, %v1520
    %v1530 = vld [vmem:[#allocation5 + $0x10] sm:$0xf]
    %v1531 = vld [vmem:[#allocation5 + $0x28] sm:$0xf]
    %v1532 = vld [vmem:[#allocation5 + $0x40] sm:$0xf]
    %v1533 = vld [vmem:[#allocation5 + $0x58] sm:$0xf]
    %v1534 = vld [vmem:[#allocation5 + $0x70] sm:$0xf]
    %v1535 = vld [vmem:[#allocation5 + $0x88] sm:$0xf]
    %v1536 = vld [vmem:[#allocation5 + $0xa0] sm:$0xf]
    %v1537 = vld [vmem:[#allocation5 + $0xb8] sm:$0xf]
    %v1538 = vld [vmem:[#allocation5 + $0xd0] sm:$0xf]
    %v1539 = vld [vmem:[#allocation5 + $0xe8] sm:$0xf]
    %v1540 = vld [vmem:[#allocation5 + $0x100] sm:$0xf]
    %v1541 = vld [vmem:[#allocation5 + $0x118] sm:$0xf]
    %v1542 = vld [vmem:[#allocation5 + $0x130] sm:$0xf]
    %v1543 = vld [vmem:[#allocation5 + $0x148] sm:$0xf]
    %v1544 = vld [vmem:[#allocation5 + $0x160] sm:$0xf]
    %v1545 = vld [vmem:[#allocation5 + $0x178] sm:$0xf]
    %v1562 = vunpack.c.l.b16 %v1530
    %v1563 = vunpack.c.l.b16 %v1531
    %v1564 = vunpack.c.l.b16 %v1532
    %v1565 = vunpack.c.l.b16 %v1533
    %v1566 = vunpack.c.l.b16 %v1534
    %v1567 = vunpack.c.l.b16 %v1535
    %v1568 = vunpack.c.l.b16 %v1536
    %v1569 = vunpack.c.l.b16 %v1537
    %v1570 = vunpack.c.l.b16 %v1538
    %v1571 = vunpack.c.l.b16 %v1539
    %v1572 = vunpack.c.l.b16 %v1540
    %v1573 = vunpack.c.l.b16 %v1541
    %v1574 = vunpack.c.l.b16 %v1542
    %v1575 = vunpack.c.l.b16 %v1543
    %v1576 = vunpack.c.l.b16 %v1544
    %v1577 = vunpack.c.l.b16 %v1545
    %v1578 = vpack.c.b16 %v1563, %v1562
    %v1579 = vpack.c.b16 %v1565, %v1564
    %v1580 = vpack.c.b16 %v1567, %v1566
    %v1581 = vpack.c.b16 %v1569, %v1568
    %v1582 = vpack.c.b16 %v1571, %v1570
    %v1583 = vpack.c.b16 %v1573, %v1572
    %v1584 = vpack.c.b16 %v1575, %v1574
    %v1585 = vpack.c.b16 %v1577, %v1576
    %1594 = vmatpush.bf16.msra.mxu0 %v1585
    %1595 = vmatpush.bf16.msra.mxu0 %v1584
    %1596 = vmatpush.bf16.msra.mxu0 %v1583
    %1597 = vmatpush.bf16.msra.mxu0 %v1582
    %1598 = vmatpush.bf16.msra.mxu0 %v1581
    %1599 = vmatpush.bf16.msra.mxu0 %v1580
    %1600 = vmatpush.bf16.msra.mxu0 %v1579
    %1601 = vmatpush.bf16.msra.mxu0 %v1578
    %1602 = vmatmul.bf16.gmra.mxu0 %v1522
    %v1603 = vpop.f32.mrf.mxu0
    %v1604 = vadd.f32 0.0, %v1603
    %v1605 = vpop.f32.mrf.mxu0
    %v1606 = vadd.f32 0.0, %v1605
    %1607 = vmatmul.bf16.gmra.mxu0 %v1523
    %v1608 = vpop.f32.mrf.mxu0
    %v1609 = vadd.f32 0.0, %v1608
    %v1610 = vpop.f32.mrf.mxu0
    %v1611 = vadd.f32 0.0, %v1610
    %1612 = vmatmul.bf16.gmra.mxu0 %v1524
    %v1613 = vpop.f32.mrf.mxu0
    %v1614 = vadd.f32 0.0, %v1613
    %v1615 = vpop.f32.mrf.mxu0
    %v1616 = vadd.f32 0.0, %v1615
    %1617 = vmatmul.bf16.gmra.mxu0 %v1525
    %v1618 = vpop.f32.mrf.mxu0
    %v1619 = vadd.f32 0.0, %v1618
    %v1620 = vpop.f32.mrf.mxu0
    %v1621 = vadd.f32 0.0, %v1620
    %1622 = vmatmul.bf16.gmra.mxu0 %v1526
    %v1623 = vpop.f32.mrf.mxu0
    %v1624 = vadd.f32 0.0, %v1623
    %v1625 = vpop.f32.mrf.mxu0
    %v1626 = vadd.f32 0.0, %v1625
    %1627 = vmatmul.bf16.gmra.mxu0 %v1527
    %v1628 = vpop.f32.mrf.mxu0
    %v1629 = vadd.f32 0.0, %v1628
    %v1630 = vpop.f32.mrf.mxu0
    %v1631 = vadd.f32 0.0, %v1630
    %1632 = vmatmul.bf16.gmra.mxu0 %v1528
    %v1633 = vpop.f32.mrf.mxu0
    %v1634 = vadd.f32 0.0, %v1633
    %v1635 = vpop.f32.mrf.mxu0
    %v1636 = vadd.f32 0.0, %v1635
    %1637 = vmatmul.bf16.gmra.mxu0 %v1529
    %v1638 = vpop.f32.mrf.mxu0
    %v1639 = vadd.f32 0.0, %v1638
    %v1640 = vpop.f32.mrf.mxu0
    %v1641 = vadd.f32 0.0, %v1640
    %1642 = vdwg.mxu0
    %v1643 = vmul.f32 %v238, %v1604
    %v1644 = vmul.f32 %v243, %v1606
    %v1645 = vmul.f32 %v248, %v1609
    %v1646 = vmul.f32 %v253, %v1611
    %v1647 = vmul.f32 %v258, %v1614
    %v1648 = vmul.f32 %v263, %v1616
    %v1649 = vmul.f32 %v268, %v1619
    %v1650 = vmul.f32 %v273, %v1621
    %v1651 = vmul.f32 %v278, %v1624
    %v1652 = vmul.f32 %v283, %v1626
    %v1653 = vmul.f32 %v288, %v1629
    %v1654 = vmul.f32 %v293, %v1631
    %v1655 = vmul.f32 %v298, %v1634
    %v1656 = vmul.f32 %v303, %v1636
    %v1657 = vmul.f32 %v308, %v1639
    %v1658 = vmul.f32 %v313, %v1641
    %v1659 = vpack.c.bf16 %v1644, %v1643
    %v1660 = vpack.c.bf16 %v1646, %v1645
    %v1661 = vpack.c.bf16 %v1648, %v1647
    %v1662 = vpack.c.bf16 %v1650, %v1649
    %v1663 = vpack.c.bf16 %v1652, %v1651
    %v1664 = vpack.c.bf16 %v1654, %v1653
    %v1665 = vpack.c.bf16 %v1656, %v1655
    %v1666 = vpack.c.bf16 %v1658, %v1657
    %1667 = vmatpush.bf16.msra.mxu0 %v1666
    %1668 = vmatpush.bf16.msra.mxu0 %v1665
    %1669 = vmatpush.bf16.msra.mxu0 %v1664
    %1670 = vmatpush.bf16.msra.mxu0 %v1663
    %1671 = vmatpush.bf16.msra.mxu0 %v1662
    %1672 = vmatpush.bf16.msra.mxu0 %v1661
    %1673 = vmatpush.bf16.msra.mxu0 %v1660
    %1674 = vmatpush.bf16.msra.mxu0 %v1659
    %1675 = vmatmul.bf16.gmra.mxu0 %v371
    %v1676 = vpop.f32.mrf.mxu0
    %v1677 = vadd.f32 0.0, %v1676
    %v1678 = vpop.f32.mrf.mxu0
    %v1679 = vadd.f32 0.0, %v1678
    %1680 = vmatmul.bf16.gmra.mxu0 %v372
    %v1681 = vpop.f32.mrf.mxu0
    %v1682 = vadd.f32 0.0, %v1681
    %v1683 = vpop.f32.mrf.mxu0
    %v1684 = vadd.f32 0.0, %v1683
    %1685 = vmatmul.bf16.gmra.mxu0 %v373
    %v1686 = vpop.f32.mrf.mxu0
    %v1687 = vadd.f32 0.0, %v1686
    %v1688 = vpop.f32.mrf.mxu0
    %v1689 = vadd.f32 0.0, %v1688
    %1690 = vmatmul.bf16.gmra.mxu0 %v374
    %v1691 = vpop.f32.mrf.mxu0
    %v1692 = vadd.f32 0.0, %v1691
    %v1693 = vpop.f32.mrf.mxu0
    %v1694 = vadd.f32 0.0, %v1693
    %1695 = vmatmul.bf16.gmra.mxu0 %v375
    %v1696 = vpop.f32.mrf.mxu0
    %v1697 = vadd.f32 0.0, %v1696
    %v1698 = vpop.f32.mrf.mxu0
    %v1699 = vadd.f32 0.0, %v1698
    %1700 = vmatmul.bf16.gmra.mxu0 %v376
    %v1701 = vpop.f32.mrf.mxu0
    %v1702 = vadd.f32 0.0, %v1701
    %v1703 = vpop.f32.mrf.mxu0
    %v1704 = vadd.f32 0.0, %v1703
    %1705 = vmatmul.bf16.gmra.mxu0 %v377
    %v1706 = vpop.f32.mrf.mxu0
    %v1707 = vadd.f32 0.0, %v1706
    %v1708 = vpop.f32.mrf.mxu0
    %v1709 = vadd.f32 0.0, %v1708
    %1710 = vmatmul.bf16.gmra.mxu0 %v378
    %v1711 = vpop.f32.mrf.mxu0
    %v1712 = vadd.f32 0.0, %v1711
    %v1713 = vpop.f32.mrf.mxu0
    %v1714 = vadd.f32 0.0, %v1713
    %1715 = vdwg.mxu0
    %v1716 = vmul.f32 %v238, %v1677
    %v1717 = vmul.f32 %v243, %v1679
    %v1718 = vmul.f32 %v248, %v1682
    %v1719 = vmul.f32 %v253, %v1684
    %v1720 = vmul.f32 %v258, %v1687
    %v1721 = vmul.f32 %v263, %v1689
    %v1722 = vmul.f32 %v268, %v1692
    %v1723 = vmul.f32 %v273, %v1694
    %v1724 = vmul.f32 %v278, %v1697
    %v1725 = vmul.f32 %v283, %v1699
    %v1726 = vmul.f32 %v288, %v1702
    %v1727 = vmul.f32 %v293, %v1704
    %v1728 = vmul.f32 %v298, %v1707
    %v1729 = vmul.f32 %v303, %v1709
    %v1730 = vmul.f32 %v308, %v1712
    %v1731 = vmul.f32 %v313, %v1714
    %v1732 = vld [vmem:[#allocation7 + $0x4] sm:$0x1]
    %v1733 = vperm.slane %v1732, 0
    %v1734 = vadd.f32 %v1716, %v1733
    %v1735 = vadd.f32 %v1717, %v1733
    %v1736 = vadd.f32 %v1718, %v1733
    %v1737 = vadd.f32 %v1719, %v1733
    %v1738 = vadd.f32 %v1720, %v1733
    %v1739 = vadd.f32 %v1721, %v1733
    %v1740 = vadd.f32 %v1722, %v1733
    %v1741 = vadd.f32 %v1723, %v1733
    %v1742 = vadd.f32 %v1724, %v1733
    %v1743 = vadd.f32 %v1725, %v1733
    %v1744 = vadd.f32 %v1726, %v1733
    %v1745 = vadd.f32 %v1727, %v1733
    %v1746 = vadd.f32 %v1728, %v1733
    %v1747 = vadd.f32 %v1729, %v1733
    %v1748 = vadd.f32 %v1730, %v1733
    %v1749 = vadd.f32 %v1731, %v1733
    %v1750 = vmax.f32 %v1734, 0.0
    %v1751 = vmax.f32 %v1735, 0.0
    %v1752 = vmax.f32 %v1736, 0.0
    %v1753 = vmax.f32 %v1737, 0.0
    %v1754 = vmax.f32 %v1738, 0.0
    %v1755 = vmax.f32 %v1739, 0.0
    %v1756 = vmax.f32 %v1740, 0.0
    %v1757 = vmax.f32 %v1741, 0.0
    %v1758 = vmax.f32 %v1742, 0.0
    %v1759 = vmax.f32 %v1743, 0.0
    %v1760 = vmax.f32 %v1744, 0.0
    %v1761 = vmax.f32 %v1745, 0.0
    %v1762 = vmax.f32 %v1746, 0.0
    %v1763 = vmax.f32 %v1747, 0.0
    %v1764 = vmax.f32 %v1748, 0.0
    %v1765 = vmax.f32 %v1749, 0.0
    %v1766 = vpack.c.bf16 %v1751, %v1750
    %v1767 = vpack.c.bf16 %v1753, %v1752
    %v1768 = vpack.c.bf16 %v1755, %v1754
    %v1769 = vpack.c.bf16 %v1757, %v1756
    %v1770 = vpack.c.bf16 %v1759, %v1758
    %v1771 = vpack.c.bf16 %v1761, %v1760
    %v1772 = vpack.c.bf16 %v1763, %v1762
    %v1773 = vpack.c.bf16 %v1765, %v1764
    %v1774 = vld [vmem:[#allocation5 + $0x14] sm:$0xf]
    %v1775 = vld [vmem:[#allocation5 + $0x2c] sm:$0xf]
    %v1776 = vld [vmem:[#allocation5 + $0x44] sm:$0xf]
    %v1777 = vld [vmem:[#allocation5 + $0x5c] sm:$0xf]
    %v1778 = vld [vmem:[#allocation5 + $0x74] sm:$0xf]
    %v1779 = vld [vmem:[#allocation5 + $0x8c] sm:$0xf]
    %v1780 = vld [vmem:[#allocation5 + $0xa4] sm:$0xf]
    %v1781 = vld [vmem:[#allocation5 + $0xbc] sm:$0xf]
    %v1782 = vld [vmem:[#allocation5 + $0xd4] sm:$0xf]
    %v1783 = vld [vmem:[#allocation5 + $0xec] sm:$0xf]
    %v1784 = vld [vmem:[#allocation5 + $0x104] sm:$0xf]
    %v1785 = vld [vmem:[#allocation5 + $0x11c] sm:$0xf]
    %v1786 = vld [vmem:[#allocation5 + $0x134] sm:$0xf]
    %v1787 = vld [vmem:[#allocation5 + $0x14c] sm:$0xf]
    %v1788 = vld [vmem:[#allocation5 + $0x164] sm:$0xf]
    %v1789 = vld [vmem:[#allocation5 + $0x17c] sm:$0xf]
    %v1806 = vunpack.c.l.b16 %v1774
    %v1807 = vunpack.c.l.b16 %v1775
    %v1808 = vunpack.c.l.b16 %v1776
    %v1809 = vunpack.c.l.b16 %v1777
    %v1810 = vunpack.c.l.b16 %v1778
    %v1811 = vunpack.c.l.b16 %v1779
    %v1812 = vunpack.c.l.b16 %v1780
    %v1813 = vunpack.c.l.b16 %v1781
    %v1814 = vunpack.c.l.b16 %v1782
    %v1815 = vunpack.c.l.b16 %v1783
    %v1816 = vunpack.c.l.b16 %v1784
    %v1817 = vunpack.c.l.b16 %v1785
    %v1818 = vunpack.c.l.b16 %v1786
    %v1819 = vunpack.c.l.b16 %v1787
    %v1820 = vunpack.c.l.b16 %v1788
    %v1821 = vunpack.c.l.b16 %v1789
    %v1822 = vpack.c.b16 %v1807, %v1806
    %v1823 = vpack.c.b16 %v1809, %v1808
    %v1824 = vpack.c.b16 %v1811, %v1810
    %v1825 = vpack.c.b16 %v1813, %v1812
    %v1826 = vpack.c.b16 %v1815, %v1814
    %v1827 = vpack.c.b16 %v1817, %v1816
    %v1828 = vpack.c.b16 %v1819, %v1818
    %v1829 = vpack.c.b16 %v1821, %v1820
    %1838 = vmatpush.bf16.msra.mxu0 %v1829
    %1839 = vmatpush.bf16.msra.mxu0 %v1828
    %1840 = vmatpush.bf16.msra.mxu0 %v1827
    %1841 = vmatpush.bf16.msra.mxu0 %v1826
    %1842 = vmatpush.bf16.msra.mxu0 %v1825
    %1843 = vmatpush.bf16.msra.mxu0 %v1824
    %1844 = vmatpush.bf16.msra.mxu0 %v1823
    %1845 = vmatpush.bf16.msra.mxu0 %v1822
    %1846 = vmatmul.bf16.gmra.mxu0 %v1766
    %v1847 = vpop.f32.mrf.mxu0
    %v1848 = vadd.f32 0.0, %v1847
    %v1849 = vpop.f32.mrf.mxu0
    %v1850 = vadd.f32 0.0, %v1849
    %1851 = vmatmul.bf16.gmra.mxu0 %v1767
    %v1852 = vpop.f32.mrf.mxu0
    %v1853 = vadd.f32 0.0, %v1852
    %v1854 = vpop.f32.mrf.mxu0
    %v1855 = vadd.f32 0.0, %v1854
    %1856 = vmatmul.bf16.gmra.mxu0 %v1768
    %v1857 = vpop.f32.mrf.mxu0
    %v1858 = vadd.f32 0.0, %v1857
    %v1859 = vpop.f32.mrf.mxu0
    %v1860 = vadd.f32 0.0, %v1859
    %1861 = vmatmul.bf16.gmra.mxu0 %v1769
    %v1862 = vpop.f32.mrf.mxu0
    %v1863 = vadd.f32 0.0, %v1862
    %v1864 = vpop.f32.mrf.mxu0
    %v1865 = vadd.f32 0.0, %v1864
    %1866 = vmatmul.bf16.gmra.mxu0 %v1770
    %v1867 = vpop.f32.mrf.mxu0
    %v1868 = vadd.f32 0.0, %v1867
    %v1869 = vpop.f32.mrf.mxu0
    %v1870 = vadd.f32 0.0, %v1869
    %1871 = vmatmul.bf16.gmra.mxu0 %v1771
    %v1872 = vpop.f32.mrf.mxu0
    %v1873 = vadd.f32 0.0, %v1872
    %v1874 = vpop.f32.mrf.mxu0
    %v1875 = vadd.f32 0.0, %v1874
    %1876 = vmatmul.bf16.gmra.mxu0 %v1772
    %v1877 = vpop.f32.mrf.mxu0
    %v1878 = vadd.f32 0.0, %v1877
    %v1879 = vpop.f32.mrf.mxu0
    %v1880 = vadd.f32 0.0, %v1879
    %1881 = vmatmul.bf16.gmra.mxu0 %v1773
    %v1882 = vpop.f32.mrf.mxu0
    %v1883 = vadd.f32 0.0, %v1882
    %v1884 = vpop.f32.mrf.mxu0
    %v1885 = vadd.f32 0.0, %v1884
    %1886 = vdwg.mxu0
    %v1887 = vmul.f32 %v238, %v1848
    %v1888 = vmul.f32 %v243, %v1850
    %v1889 = vmul.f32 %v248, %v1853
    %v1890 = vmul.f32 %v253, %v1855
    %v1891 = vmul.f32 %v258, %v1858
    %v1892 = vmul.f32 %v263, %v1860
    %v1893 = vmul.f32 %v268, %v1863
    %v1894 = vmul.f32 %v273, %v1865
    %v1895 = vmul.f32 %v278, %v1868
    %v1896 = vmul.f32 %v283, %v1870
    %v1897 = vmul.f32 %v288, %v1873
    %v1898 = vmul.f32 %v293, %v1875
    %v1899 = vmul.f32 %v298, %v1878
    %v1900 = vmul.f32 %v303, %v1880
    %v1901 = vmul.f32 %v308, %v1883
    %v1902 = vmul.f32 %v313, %v1885
    %v1903 = vpack.c.bf16 %v1888, %v1887
    %v1904 = vpack.c.bf16 %v1890, %v1889
    %v1905 = vpack.c.bf16 %v1892, %v1891
    %v1906 = vpack.c.bf16 %v1894, %v1893
    %v1907 = vpack.c.bf16 %v1896, %v1895
    %v1908 = vpack.c.bf16 %v1898, %v1897
    %v1909 = vpack.c.bf16 %v1900, %v1899
    %v1910 = vpack.c.bf16 %v1902, %v1901
    %1911 = vmatpush.bf16.msra.mxu0 %v1910
    %1912 = vmatpush.bf16.msra.mxu0 %v1909
    %1913 = vmatpush.bf16.msra.mxu0 %v1908
    %1914 = vmatpush.bf16.msra.mxu0 %v1907
    %1915 = vmatpush.bf16.msra.mxu0 %v1906
    %1916 = vmatpush.bf16.msra.mxu0 %v1905
    %1917 = vmatpush.bf16.msra.mxu0 %v1904
    %1918 = vmatpush.bf16.msra.mxu0 %v1903
    %1919 = vmatmul.bf16.gmra.mxu0 %v371
    %v1920 = vpop.f32.mrf.mxu0
    %v1921 = vadd.f32 0.0, %v1920
    %v1922 = vpop.f32.mrf.mxu0
    %v1923 = vadd.f32 0.0, %v1922
    %1924 = vmatmul.bf16.gmra.mxu0 %v372
    %v1925 = vpop.f32.mrf.mxu0
    %v1926 = vadd.f32 0.0, %v1925
    %v1927 = vpop.f32.mrf.mxu0
    %v1928 = vadd.f32 0.0, %v1927
    %1929 = vmatmul.bf16.gmra.mxu0 %v373
    %v1930 = vpop.f32.mrf.mxu0
    %v1931 = vadd.f32 0.0, %v1930
    %v1932 = vpop.f32.mrf.mxu0
    %v1933 = vadd.f32 0.0, %v1932
    %1934 = vmatmul.bf16.gmra.mxu0 %v374
    %v1935 = vpop.f32.mrf.mxu0
    %v1936 = vadd.f32 0.0, %v1935
    %v1937 = vpop.f32.mrf.mxu0
    %v1938 = vadd.f32 0.0, %v1937
    %1939 = vmatmul.bf16.gmra.mxu0 %v375
    %v1940 = vpop.f32.mrf.mxu0
    %v1941 = vadd.f32 0.0, %v1940
    %v1942 = vpop.f32.mrf.mxu0
    %v1943 = vadd.f32 0.0, %v1942
    %1944 = vmatmul.bf16.gmra.mxu0 %v376
    %v1945 = vpop.f32.mrf.mxu0
    %v1946 = vadd.f32 0.0, %v1945
    %v1947 = vpop.f32.mrf.mxu0
    %v1948 = vadd.f32 0.0, %v1947
    %1949 = vmatmul.bf16.gmra.mxu0 %v377
    %v1950 = vpop.f32.mrf.mxu0
    %v1951 = vadd.f32 0.0, %v1950
    %v1952 = vpop.f32.mrf.mxu0
    %v1953 = vadd.f32 0.0, %v1952
    %1954 = vmatmul.bf16.gmra.mxu0 %v378
    %v1955 = vpop.f32.mrf.mxu0
    %v1956 = vadd.f32 0.0, %v1955
    %v1957 = vpop.f32.mrf.mxu0
    %v1958 = vadd.f32 0.0, %v1957
    %1959 = vdwg.mxu0
    %v1960 = vmul.f32 %v238, %v1921
    %v1961 = vmul.f32 %v243, %v1923
    %v1962 = vmul.f32 %v248, %v1926
    %v1963 = vmul.f32 %v253, %v1928
    %v1964 = vmul.f32 %v258, %v1931
    %v1965 = vmul.f32 %v263, %v1933
    %v1966 = vmul.f32 %v268, %v1936
    %v1967 = vmul.f32 %v273, %v1938
    %v1968 = vmul.f32 %v278, %v1941
    %v1969 = vmul.f32 %v283, %v1943
    %v1970 = vmul.f32 %v288, %v1946
    %v1971 = vmul.f32 %v293, %v1948
    %v1972 = vmul.f32 %v298, %v1951
    %v1973 = vmul.f32 %v303, %v1953
    %v1974 = vmul.f32 %v308, %v1956
    %v1975 = vmul.f32 %v313, %v1958
    %v1976 = vld [vmem:[#allocation7 + $0x5] sm:$0x1]
    %v1977 = vperm.slane %v1976, 0
    %v1978 = vadd.f32 %v1960, %v1977
    %v1979 = vadd.f32 %v1961, %v1977
    %v1980 = vadd.f32 %v1962, %v1977
    %v1981 = vadd.f32 %v1963, %v1977
    %v1982 = vadd.f32 %v1964, %v1977
    %v1983 = vadd.f32 %v1965, %v1977
    %v1984 = vadd.f32 %v1966, %v1977
    %v1985 = vadd.f32 %v1967, %v1977
    %v1986 = vadd.f32 %v1968, %v1977
    %v1987 = vadd.f32 %v1969, %v1977
    %v1988 = vadd.f32 %v1970, %v1977
    %v1989 = vadd.f32 %v1971, %v1977
    %v1990 = vadd.f32 %v1972, %v1977
    %v1991 = vadd.f32 %v1973, %v1977
    %v1992 = vadd.f32 %v1974, %v1977
    %v1993 = vadd.f32 %v1975, %v1977
    %v1994 = vlaneseq
    %v1995 = vand.u32 %v1994, 127
    %vm1996 = vcmp.lt.s32.totalorder %v1995, 5
    %v1997 = vsel %vm1996, %v1978, -1e+30
    %v1998 = vsel %vm1996, %v1979, -1e+30
    %v1999 = vsel %vm1996, %v1980, -1e+30
    %v2000 = vsel %vm1996, %v1981, -1e+30
    %v2001 = vsel %vm1996, %v1982, -1e+30
    %v2002 = vsel %vm1996, %v1983, -1e+30
    %v2003 = vsel %vm1996, %v1984, -1e+30
    %v2004 = vsel %vm1996, %v1985, -1e+30
    %v2005 = vsel %vm1996, %v1986, -1e+30
    %v2006 = vsel %vm1996, %v1987, -1e+30
    %v2007 = vsel %vm1996, %v1988, -1e+30
    %v2008 = vsel %vm1996, %v1989, -1e+30
    %v2009 = vsel %vm1996, %v1990, -1e+30
    %v2010 = vsel %vm1996, %v1991, -1e+30
    %v2011 = vsel %vm1996, %v1992, -1e+30
    %v2012 = vsel %vm1996, %v1993, -1e+30
    %2013 = vmax.xlane.f32.xlu0 %v1997
    %v2014 = vpop.xlane.xlu0 %2013
    %2015 = vmax.xlane.f32.xlu0 %v1998
    %v2016 = vpop.xlane.xlu0 %2015
    %2017 = vmax.xlane.f32.xlu0 %v1999
    %v2018 = vpop.xlane.xlu0 %2017
    %2019 = vmax.xlane.f32.xlu0 %v2000
    %v2020 = vpop.xlane.xlu0 %2019
    %2021 = vmax.xlane.f32.xlu0 %v2001
    %v2022 = vpop.xlane.xlu0 %2021
    %2023 = vmax.xlane.f32.xlu0 %v2002
    %v2024 = vpop.xlane.xlu0 %2023
    %2025 = vmax.xlane.f32.xlu0 %v2003
    %v2026 = vpop.xlane.xlu0 %2025
    %2027 = vmax.xlane.f32.xlu0 %v2004
    %v2028 = vpop.xlane.xlu0 %2027
    %2029 = vmax.xlane.f32.xlu0 %v2005
    %v2030 = vpop.xlane.xlu0 %2029
    %2031 = vmax.xlane.f32.xlu0 %v2006
    %v2032 = vpop.xlane.xlu0 %2031
    %2033 = vmax.xlane.f32.xlu0 %v2007
    %v2034 = vpop.xlane.xlu0 %2033
    %2035 = vmax.xlane.f32.xlu0 %v2008
    %v2036 = vpop.xlane.xlu0 %2035
    %2037 = vmax.xlane.f32.xlu0 %v2009
    %v2038 = vpop.xlane.xlu0 %2037
    %2039 = vmax.xlane.f32.xlu0 %v2010
    %v2040 = vpop.xlane.xlu0 %2039
    %2041 = vmax.xlane.f32.xlu0 %v2011
    %v2042 = vpop.xlane.xlu0 %2041
    %2043 = vmax.xlane.f32.xlu0 %v2012
    %v2044 = vpop.xlane.xlu0 %2043
    %v2045 = vsub.f32 %v1997, %v2014
    %v2046 = vsub.f32 %v1998, %v2016
    %v2047 = vsub.f32 %v1999, %v2018
    %v2048 = vsub.f32 %v2000, %v2020
    %v2049 = vsub.f32 %v2001, %v2022
    %v2050 = vsub.f32 %v2002, %v2024
    %v2051 = vsub.f32 %v2003, %v2026
    %v2052 = vsub.f32 %v2004, %v2028
    %v2053 = vsub.f32 %v2005, %v2030
    %v2054 = vsub.f32 %v2006, %v2032
    %v2055 = vsub.f32 %v2007, %v2034
    %v2056 = vsub.f32 %v2008, %v2036
    %v2057 = vsub.f32 %v2009, %v2038
    %v2058 = vsub.f32 %v2010, %v2040
    %v2059 = vsub.f32 %v2011, %v2042
    %v2060 = vsub.f32 %v2012, %v2044
    %v2061 = vmul.f32 %v2045, 1.442695
    %v2062 = vpow.pop %v2061
    %v2063 = vmul.f32 %v2046, 1.442695
    %v2064 = vpow.pop %v2063
    %v2065 = vmul.f32 %v2047, 1.442695
    %v2066 = vpow.pop %v2065
    %v2067 = vmul.f32 %v2048, 1.442695
    %v2068 = vpow.pop %v2067
    %v2069 = vmul.f32 %v2049, 1.442695
    %v2070 = vpow.pop %v2069
    %v2071 = vmul.f32 %v2050, 1.442695
    %v2072 = vpow.pop %v2071
    %v2073 = vmul.f32 %v2051, 1.442695
    %v2074 = vpow.pop %v2073
    %v2075 = vmul.f32 %v2052, 1.442695
    %v2076 = vpow.pop %v2075
    %v2077 = vmul.f32 %v2053, 1.442695
    %v2078 = vpow.pop %v2077
    %v2079 = vmul.f32 %v2054, 1.442695
    %v2080 = vpow.pop %v2079
    %v2081 = vmul.f32 %v2055, 1.442695
    %v2082 = vpow.pop %v2081
    %v2083 = vmul.f32 %v2056, 1.442695
    %v2084 = vpow.pop %v2083
    %v2085 = vmul.f32 %v2057, 1.442695
    %v2086 = vpow.pop %v2085
    %v2087 = vmul.f32 %v2058, 1.442695
    %v2088 = vpow.pop %v2087
    %v2089 = vmul.f32 %v2059, 1.442695
    %v2090 = vpow.pop %v2089
    %v2091 = vmul.f32 %v2060, 1.442695
    %v2092 = vpow.pop %v2091
    %2093 = vadd.xlane.f32.xlu0 %v2062
    %v2094 = vpop.xlane.xlu0 %2093
    %2095 = vadd.xlane.f32.xlu0 %v2064
    %v2096 = vpop.xlane.xlu0 %2095
    %2097 = vadd.xlane.f32.xlu0 %v2066
    %v2098 = vpop.xlane.xlu0 %2097
    %2099 = vadd.xlane.f32.xlu0 %v2068
    %v2100 = vpop.xlane.xlu0 %2099
    %2101 = vadd.xlane.f32.xlu0 %v2070
    %v2102 = vpop.xlane.xlu0 %2101
    %2103 = vadd.xlane.f32.xlu0 %v2072
    %v2104 = vpop.xlane.xlu0 %2103
    %2105 = vadd.xlane.f32.xlu0 %v2074
    %v2106 = vpop.xlane.xlu0 %2105
    %2107 = vadd.xlane.f32.xlu0 %v2076
    %v2108 = vpop.xlane.xlu0 %2107
    %2109 = vadd.xlane.f32.xlu0 %v2078
    %v2110 = vpop.xlane.xlu0 %2109
    %2111 = vadd.xlane.f32.xlu0 %v2080
    %v2112 = vpop.xlane.xlu0 %2111
    %2113 = vadd.xlane.f32.xlu0 %v2082
    %v2114 = vpop.xlane.xlu0 %2113
    %2115 = vadd.xlane.f32.xlu0 %v2084
    %v2116 = vpop.xlane.xlu0 %2115
    %2117 = vadd.xlane.f32.xlu0 %v2086
    %v2118 = vpop.xlane.xlu0 %2117
    %2119 = vadd.xlane.f32.xlu0 %v2088
    %v2120 = vpop.xlane.xlu0 %2119
    %2121 = vadd.xlane.f32.xlu0 %v2090
    %v2122 = vpop.xlane.xlu0 %2121
    %2123 = vadd.xlane.f32.xlu0 %v2092
    %v2124 = vpop.xlane.xlu0 %2123
    %v2125 = vlog2.pop %v2094
    %v2126 = vmul.f32 %v2125, 0.6931472
    %v2127 = vlog2.pop %v2096
    %v2128 = vmul.f32 %v2127, 0.6931472
    %v2129 = vlog2.pop %v2098
    %v2130 = vmul.f32 %v2129, 0.6931472
    %v2131 = vlog2.pop %v2100
    %v2132 = vmul.f32 %v2131, 0.6931472
    %v2133 = vlog2.pop %v2102
    %v2134 = vmul.f32 %v2133, 0.6931472
    %v2135 = vlog2.pop %v2104
    %v2136 = vmul.f32 %v2135, 0.6931472
    %v2137 = vlog2.pop %v2106
    %v2138 = vmul.f32 %v2137, 0.6931472
    %v2139 = vlog2.pop %v2108
    %v2140 = vmul.f32 %v2139, 0.6931472
    %v2141 = vlog2.pop %v2110
    %v2142 = vmul.f32 %v2141, 0.6931472
    %v2143 = vlog2.pop %v2112
    %v2144 = vmul.f32 %v2143, 0.6931472
    %v2145 = vlog2.pop %v2114
    %v2146 = vmul.f32 %v2145, 0.6931472
    %v2147 = vlog2.pop %v2116
    %v2148 = vmul.f32 %v2147, 0.6931472
    %v2149 = vlog2.pop %v2118
    %v2150 = vmul.f32 %v2149, 0.6931472
    %v2151 = vlog2.pop %v2120
    %v2152 = vmul.f32 %v2151, 0.6931472
    %v2153 = vlog2.pop %v2122
    %v2154 = vmul.f32 %v2153, 0.6931472
    %v2155 = vlog2.pop %v2124
    %v2156 = vmul.f32 %v2155, 0.6931472
    %v2157 = vadd.f32 %v2126, %v2014
    %v2158 = vadd.f32 %v2128, %v2016
    %v2159 = vadd.f32 %v2130, %v2018
    %v2160 = vadd.f32 %v2132, %v2020
    %v2161 = vadd.f32 %v2134, %v2022
    %v2162 = vadd.f32 %v2136, %v2024
    %v2163 = vadd.f32 %v2138, %v2026
    %v2164 = vadd.f32 %v2140, %v2028
    %v2165 = vadd.f32 %v2142, %v2030
    %v2166 = vadd.f32 %v2144, %v2032
    %v2167 = vadd.f32 %v2146, %v2034
    %v2168 = vadd.f32 %v2148, %v2036
    %v2169 = vadd.f32 %v2150, %v2038
    %v2170 = vadd.f32 %v2152, %v2040
    %v2171 = vadd.f32 %v2154, %v2042
    %v2172 = vadd.f32 %v2156, %v2044
    %v2173 = vsub.f32 %v1978, %v2157
    %v2174 = vsub.f32 %v1979, %v2158
    %v2175 = vsub.f32 %v1980, %v2159
    %v2176 = vsub.f32 %v1981, %v2160
    %v2177 = vsub.f32 %v1982, %v2161
    %v2178 = vsub.f32 %v1983, %v2162
    %v2179 = vsub.f32 %v1984, %v2163
    %v2180 = vsub.f32 %v1985, %v2164
    %v2181 = vsub.f32 %v1986, %v2165
    %v2182 = vsub.f32 %v1987, %v2166
    %v2183 = vsub.f32 %v1988, %v2167
    %v2184 = vsub.f32 %v1989, %v2168
    %v2185 = vsub.f32 %v1990, %v2169
    %v2186 = vsub.f32 %v1991, %v2170
    %v2187 = vsub.f32 %v1992, %v2171
    %v2188 = vsub.f32 %v1993, %v2172
    %2189 = vst [vmem:[#allocation8] sm:$0xff] %v2173
    %2190 = vst [vmem:[#allocation8 + $0x8] sm:$0xff] %v2174
    %2191 = vst [vmem:[#allocation8 + $0x10] sm:$0xff] %v2175
    %2192 = vst [vmem:[#allocation8 + $0x18] sm:$0xff] %v2176
    %2193 = vst [vmem:[#allocation8 + $0x20] sm:$0xff] %v2177
    %2194 = vst [vmem:[#allocation8 + $0x28] sm:$0xff] %v2178
    %2195 = vst [vmem:[#allocation8 + $0x30] sm:$0xff] %v2179
    %2196 = vst [vmem:[#allocation8 + $0x38] sm:$0xff] %v2180
    %2197 = vst [vmem:[#allocation8 + $0x40] sm:$0xff] %v2181
    %2198 = vst [vmem:[#allocation8 + $0x48] sm:$0xff] %v2182
    %2199 = vst [vmem:[#allocation8 + $0x50] sm:$0xff] %v2183
    %2200 = vst [vmem:[#allocation8 + $0x58] sm:$0xff] %v2184
    %2201 = vst [vmem:[#allocation8 + $0x60] sm:$0xff] %v2185
    %2202 = vst [vmem:[#allocation8 + $0x68] sm:$0xff] %v2186
    %2203 = vst [vmem:[#allocation8 + $0x70] sm:$0xff] %v2187
    %2204 = vst [vmem:[#allocation8 + $0x78] sm:$0xff] %v2188
    // Predicated region
    $region34: #{tpu_custom_call.1} parent=1 // pred_check
      _
    $region35: #{tpu_custom_call.1} parent=1 // pred_check_branch
      %2206 = sbr.rel (0) target = $region37
    $region36: #{tpu_custom_call.1} parent=1 // pred_region
      %2208 = vsyncadd [#allocation4], 0
      %s2209 = sshll.u32 [#allocation8], 4
      %s2210 = int_to_ptr.vmem [resolvable:$true] %s2209
      %s2211 = sshll.u32 %s5, 4
      %s2212 = int_to_ptr.hbm [resolvable:$true] %s2211
      %2217 = dma.vmem_to_hbm [thread:$0]  %s2210, 2048, %s2212, [#allocation4], 128, 128, 8
    $region37: #{tpu_custom_call.1} parent=1 // pred_fallthru
      _
    // Predicated region
    $region38: #{tpu_custom_call.1} parent=1 // pred_check
      _
    $region39: #{tpu_custom_call.1} parent=1 // pred_check_branch
      %2219 = sbr.rel (0) target = $region41
    $region40: #{tpu_custom_call.1} parent=1 // pred_region
      %2221 = dma.done [#allocation4], 2048
    $region41: #{tpu_custom_call.1} parent=1 // pred_fallthru
      _
    %2222 = vsyncpa [#allocation3], 1
    %2223 = vsyncpa [#allocation6], 1
    %2224 = vsyncpa [#allocation4], 1

</llo_original>
